<compile_context>
chip_gen: v6e
topology: v6e:2x2x1
jax: 0.10.0
libtpu: 0.0.40
codegen_flags: <defaults>
</compile_context>

<pallas_src>
import jax
import jax.numpy as jnp
from jax.experimental import pallas as pl
from jax.experimental.pallas import tpu as pltpu


def vamp_encoder_kernel(x_ref, w1_ref, b1_ref, w2_ref, b2_ref,
                        w3m_ref, b3m_ref, w3s_ref, b3s_ref,
                        mean_ref, std_ref):
    """One K-tile of the encoder MLP over the pseudo-inputs.

    bf16 matmuls on the MXU with f32 accumulation; bias-add/ReLU/exp in f32.
    Mean and log_std heads are separate lane-dense weights -> direct writes.
    """
    x = x_ref[...]                                                       # (TK, D) bf16
    h1 = jnp.dot(x, w1_ref[...], preferred_element_type=jnp.float32) + b1_ref[...]
    h1 = jnp.maximum(h1, 0.0).astype(jnp.bfloat16)                       # (TK, H)
    h2 = jnp.dot(h1, w2_ref[...], preferred_element_type=jnp.float32) + b2_ref[...]
    h2 = jnp.maximum(h2, 0.0).astype(jnp.bfloat16)                       # (TK, H)
    mean_ref[...] = (jnp.dot(h2, w3m_ref[...],
                             preferred_element_type=jnp.float32) + b3m_ref[...])
    log_std = (jnp.dot(h2, w3s_ref[...],
                       preferred_element_type=jnp.float32) + b3s_ref[...])
    std_ref[...] = jnp.exp(log_std)                                      # EUP slot, f32


def vamp_prior_forward(pseudo_inputs, logits, params, *, tile_k=128):
    """Returns (logits, means, stds) — the parameters of the Vamp mixture prior."""
    w1, b1, w2, b2, w3, b3 = params
    K, D = pseudo_inputs.shape
    H = w1.shape[1]
    M = w3.shape[1] // 2

    # Split the fused head into lane-dense mean / log_std halves
    # (identical to torch.chunk(out, 2, dim=-1) applied to the fused layer).
    w3m, w3s = w3[:, :M], w3[:, M:]
    b3m, b3s = b3[:, :M], b3[:, M:]

    # bf16 operands for the MXU; accumulation stays f32 inside the kernel.
    to_bf16 = lambda a: a.astype(jnp.bfloat16)
    x_bf = to_bf16(pseudo_inputs)
    w1_bf, w2_bf, w3m_bf, w3s_bf = map(to_bf16, (w1, w2, w3m, w3s))

    # Tile the K axis (fall back to a single tile if K doesn't divide cleanly).
    tk = tile_k if (K % tile_k == 0) else K
    grid = (K // tk,)

    k_block = lambda shape: pl.BlockSpec(shape, lambda i: (i, 0))    # tiled over K
    resident = lambda shape: pl.BlockSpec(shape, lambda i: (0, 0))   # VMEM-resident

    means, stds = pl.pallas_call(
        vamp_encoder_kernel,
        out_shape=(
            jax.ShapeDtypeStruct((K, M), jnp.float32),
            jax.ShapeDtypeStruct((K, M), jnp.float32),
        ),
        grid=grid,
        in_specs=[
            k_block((tk, D)),                       # pseudo-inputs, K-tiled
            resident((D, H)), resident((1, H)),     # layer 1
            resident((H, H)), resident((1, H)),     # layer 2
            resident((H, M)), resident((1, M)),     # mean head
            resident((H, M)), resident((1, M)),     # log_std head
        ],
        out_specs=(k_block((tk, M)), k_block((tk, M))),
        compiler_params=pltpu.CompilerParams(
            # K tiles are independent -> shard across both TCs on v7x megacore.
            dimension_semantics=("parallel",)),
    )(x_bf, w1_bf, b1, w2_bf, b2, w3m_bf, b3m, w3s_bf, b3s)

    # mixture_dist = Categorical(logits); component_dist = Independent(Normal(means, stds), 1)
    return logits, means, stds


def init_params(key, input_dim, hidden, M):
    ks = jax.random.split(key, 3)
    w1 = jax.random.normal(ks[0], (input_dim, hidden), jnp.float32) * 0.1
    b1 = jnp.zeros((1, hidden), jnp.float32)
    w2 = jax.random.normal(ks[1], (hidden, hidden), jnp.float32) * 0.1
    b2 = jnp.zeros((1, hidden), jnp.float32)
    w3 = jax.random.normal(ks[2], (hidden, 2 * M), jnp.float32) * 0.1
    b3 = jnp.zeros((1, 2 * M), jnp.float32)
    return w1, b1, w2, b2, w3, b3


def reference_forward(pseudo_inputs, logits, params):
    """Plain-JAX reference mirroring the kernel's bf16-matmul / f32-accumulate math."""
    w1, b1, w2, b2, w3, b3 = params
    dot_bf16 = lambda a, b: jnp.dot(a.astype(jnp.bfloat16), b.astype(jnp.bfloat16),
                                    preferred_element_type=jnp.float32)
    h1 = jnp.maximum(dot_bf16(pseudo_inputs, w1) + b1, 0.0)
    h2 = jnp.maximum(dot_bf16(h1, w2) + b2, 0.0)
    out = dot_bf16(h2, w3) + b3
    M = w3.shape[1] // 2
    return logits, out[:, :M], jnp.exp(out[:, M:])


if __name__ == "__main__":
    # Lane-aligned shapes (multiples of 128) so vregs are fully live and stores
    # are unmasked; K=256 gives two parallel K-tiles of 128 rows each.
    K, input_dim, hidden, M = 256, 256, 256, 128

    key = jax.random.PRNGKey(0)
    k_pi, k_params = jax.random.split(key)

    # nn.Parameter(torch.randn(K, input_dim)) -> deterministic synthetic init
    pseudo_inputs = jax.random.normal(k_pi, (K, input_dim), jnp.float32)
    # nn.Parameter(torch.zeros(K))
    logits = jnp.zeros((K,), jnp.float32)
    params = init_params(k_params, input_dim, hidden, M)

    fwd = jax.jit(vamp_prior_forward)
    logits_out, means, stds = jax.block_until_ready(
        fwd(pseudo_inputs, logits, params))

    # Sanity check against the plain-JAX reference (same bf16/f32 math).
    _, means_ref, stds_ref = reference_forward(pseudo_inputs, logits, params)
    assert means.shape == (K, M) and stds.shape == (K, M) and logits_out.shape == (K,)
    assert jnp.allclose(means, means_ref, atol=5e-3, rtol=5e-3)
    assert jnp.allclose(stds, stds_ref, atol=5e-3, rtol=5e-3)
    assert bool(jnp.all(stds > 0))

    # TODO(synk): torch.distributions.MixtureSameFamily object construction has no
    # Pallas equivalent; the kernel emits its parameters (logits, means, stds).
    print("KERNEL_OK")
</pallas_src>

<mosaic_0001>
module attributes {stable_mosaic.version = 11 : i64} {
  func.func @vamp_encoder_kernel(%arg0: i32, %arg1: memref<128x256xbf16, #tpu.memory_space<vmem>>, %arg2: memref<256x256xbf16, #tpu.memory_space<vmem>>, %arg3: memref<1x256xf32, #tpu.memory_space<vmem>>, %arg4: memref<256x256xbf16, #tpu.memory_space<vmem>>, %arg5: memref<1x256xf32, #tpu.memory_space<vmem>>, %arg6: memref<256x128xbf16, #tpu.memory_space<vmem>>, %arg7: memref<1x128xf32, #tpu.memory_space<vmem>>, %arg8: memref<256x128xbf16, #tpu.memory_space<vmem>>, %arg9: memref<1x128xf32, #tpu.memory_space<vmem>>, %arg10: memref<128x128xf32, #tpu.memory_space<vmem>>, %arg11: memref<128x128xf32, #tpu.memory_space<vmem>>) attributes {dimension_semantics = [#tpu.dimension_semantics<parallel>], iteration_bounds = array<i64: 2>, scalar_prefetch = 0 : i64, scratch_operands = 0 : i64, tpu.core_type = #tpu.core_type<tc>, window_params = [{transform_indices = @transform_0, window_bounds = array<i64: 128, 256>}, {pipeline_mode = #tpu.pipeline_mode<synchronous>, transform_indices = @transform_1, window_bounds = array<i64: 256, 256>}, {pipeline_mode = #tpu.pipeline_mode<synchronous>, transform_indices = @transform_2, window_bounds = array<i64: 1, 256>}, {pipeline_mode = #tpu.pipeline_mode<synchronous>, transform_indices = @transform_3, window_bounds = array<i64: 256, 256>}, {pipeline_mode = #tpu.pipeline_mode<synchronous>, transform_indices = @transform_4, window_bounds = array<i64: 1, 256>}, {pipeline_mode = #tpu.pipeline_mode<synchronous>, transform_indices = @transform_5, window_bounds = array<i64: 256, 128>}, {pipeline_mode = #tpu.pipeline_mode<synchronous>, transform_indices = @transform_6, window_bounds = array<i64: 1, 128>}, {pipeline_mode = #tpu.pipeline_mode<synchronous>, transform_indices = @transform_7, window_bounds = array<i64: 256, 128>}, {pipeline_mode = #tpu.pipeline_mode<synchronous>, transform_indices = @transform_8, window_bounds = array<i64: 1, 128>}, {transform_indices = @transform_9, window_bounds = array<i64: 128, 128>}, {transform_indices = @transform_10, window_bounds = array<i64: 128, 128>}]} {
    %c0 = arith.constant 0 : index
    %c0_0 = arith.constant 0 : index
    %0 = vector.load %arg1[%c0, %c0_0] : memref<128x256xbf16, #tpu.memory_space<vmem>>, vector<128x256xbf16>
    %c0_1 = arith.constant 0 : index
    %c0_2 = arith.constant 0 : index
    %1 = vector.load %arg2[%c0_1, %c0_2] : memref<256x256xbf16, #tpu.memory_space<vmem>>, vector<256x256xbf16>
    %cst = arith.constant dense<0.000000e+00> : vector<128x256xf32>
    %2 = tpu.matmul %0, %1, %cst {dimension_numbers = #tpu.dot_dimension_numbers<[1], [0], [0], [1], [0, 0, 1, 1], [], []>} : vector<128x256xbf16>, vector<256x256xbf16>, vector<128x256xf32> -> vector<128x256xf32>
    %c0_3 = arith.constant 0 : index
    %c0_4 = arith.constant 0 : index
    %3 = vector.load %arg3[%c0_3, %c0_4] : memref<1x256xf32, #tpu.memory_space<vmem>>, vector<1x256xf32>
    %4 = vector.broadcast %3 : vector<1x256xf32> to vector<128x256xf32>
    %5 = arith.addf %2, %4 : vector<128x256xf32>
    %cst_5 = arith.constant 0.000000e+00 : f32
    %6 = vector.broadcast %cst_5 : f32 to vector<128x256xf32>
    %7 = arith.maximumf %5, %6 : vector<128x256xf32>
    %8 = arith.truncf %7 : vector<128x256xf32> to vector<128x256xbf16>
    %c0_6 = arith.constant 0 : index
    %c0_7 = arith.constant 0 : index
    %9 = vector.load %arg4[%c0_6, %c0_7] : memref<256x256xbf16, #tpu.memory_space<vmem>>, vector<256x256xbf16>
    %cst_8 = arith.constant dense<0.000000e+00> : vector<128x256xf32>
    %10 = tpu.matmul %8, %9, %cst_8 {dimension_numbers = #tpu.dot_dimension_numbers<[1], [0], [0], [1], [0, 0, 1, 1], [], []>} : vector<128x256xbf16>, vector<256x256xbf16>, vector<128x256xf32> -> vector<128x256xf32>
    %c0_9 = arith.constant 0 : index
    %c0_10 = arith.constant 0 : index
    %11 = vector.load %arg5[%c0_9, %c0_10] : memref<1x256xf32, #tpu.memory_space<vmem>>, vector<1x256xf32>
    %12 = vector.broadcast %11 : vector<1x256xf32> to vector<128x256xf32>
    %13 = arith.addf %10, %12 : vector<128x256xf32>
    %cst_11 = arith.constant 0.000000e+00 : f32
    %14 = vector.broadcast %cst_11 : f32 to vector<128x256xf32>
    %15 = arith.maximumf %13, %14 : vector<128x256xf32>
    %16 = arith.truncf %15 : vector<128x256xf32> to vector<128x256xbf16>
    %c0_12 = arith.constant 0 : index
    %c0_13 = arith.constant 0 : index
    %17 = vector.load %arg6[%c0_12, %c0_13] : memref<256x128xbf16, #tpu.memory_space<vmem>>, vector<256x128xbf16>
    %cst_14 = arith.constant dense<0.000000e+00> : vector<128x128xf32>
    %18 = tpu.matmul %16, %17, %cst_14 {dimension_numbers = #tpu.dot_dimension_numbers<[1], [0], [0], [1], [0, 0, 1, 1], [], []>} : vector<128x256xbf16>, vector<256x128xbf16>, vector<128x128xf32> -> vector<128x128xf32>
    %c0_15 = arith.constant 0 : index
    %c0_16 = arith.constant 0 : index
    %19 = vector.load %arg7[%c0_15, %c0_16] : memref<1x128xf32, #tpu.memory_space<vmem>>, vector<1x128xf32>
    %20 = vector.broadcast %19 : vector<1x128xf32> to vector<128x128xf32>
    %21 = arith.addf %18, %20 : vector<128x128xf32>
    %c0_17 = arith.constant 0 : index
    %c0_18 = arith.constant 0 : index
    %22 = vector.load %arg10[%c0_17, %c0_18] : memref<128x128xf32, #tpu.memory_space<vmem>>, vector<128x128xf32>
    tpu.vector_store %arg10[%c0_17, %c0_18], %21 {strides = array<i32>} : memref<128x128xf32, #tpu.memory_space<vmem>>, vector<128x128xf32>,
    %c0_19 = arith.constant 0 : index
    %c0_20 = arith.constant 0 : index
    %23 = vector.load %arg8[%c0_19, %c0_20] : memref<256x128xbf16, #tpu.memory_space<vmem>>, vector<256x128xbf16>
    %cst_21 = arith.constant dense<0.000000e+00> : vector<128x128xf32>
    %24 = tpu.matmul %16, %23, %cst_21 {dimension_numbers = #tpu.dot_dimension_numbers<[1], [0], [0], [1], [0, 0, 1, 1], [], []>} : vector<128x256xbf16>, vector<256x128xbf16>, vector<128x128xf32> -> vector<128x128xf32>
    %c0_22 = arith.constant 0 : index
    %c0_23 = arith.constant 0 : index
    %25 = vector.load %arg9[%c0_22, %c0_23] : memref<1x128xf32, #tpu.memory_space<vmem>>, vector<1x128xf32>
    %26 = vector.broadcast %25 : vector<1x128xf32> to vector<128x128xf32>
    %27 = arith.addf %24, %26 : vector<128x128xf32>
    %28 = math.exp %27 : vector<128x128xf32>
    %c0_24 = arith.constant 0 : index
    %c0_25 = arith.constant 0 : index
    %29 = vector.load %arg11[%c0_24, %c0_25] : memref<128x128xf32, #tpu.memory_space<vmem>>, vector<128x128xf32>
    tpu.vector_store %arg11[%c0_24, %c0_25], %28 {strides = array<i32>} : memref<128x128xf32, #tpu.memory_space<vmem>>, vector<128x128xf32>,
    return
  }
  func.func @transform_0(%arg0: i32) -> (i32, i32) {
    %c0_i32 = arith.constant 0 : i32
    %c0_i32_0 = arith.constant 0 : i32
    return %arg0, %c0_i32 : i32, i32
  }
  func.func @transform_1(%arg0: i32) -> (i32, i32) {
    %c0_i32 = arith.constant 0 : i32
    %c0_i32_0 = arith.constant 0 : i32
    %c0_i32_1 = arith.constant 0 : i32
    return %c0_i32, %c0_i32_0 : i32, i32
  }
  func.func @transform_2(%arg0: i32) -> (i32, i32) {
    %c0_i32 = arith.constant 0 : i32
    %c0_i32_0 = arith.constant 0 : i32
    %c0_i32_1 = arith.constant 0 : i32
    return %c0_i32, %c0_i32_0 : i32, i32
  }
  func.func @transform_3(%arg0: i32) -> (i32, i32) {
    %c0_i32 = arith.constant 0 : i32
    %c0_i32_0 = arith.constant 0 : i32
    %c0_i32_1 = arith.constant 0 : i32
    return %c0_i32, %c0_i32_0 : i32, i32
  }
  func.func @transform_4(%arg0: i32) -> (i32, i32) {
    %c0_i32 = arith.constant 0 : i32
    %c0_i32_0 = arith.constant 0 : i32
    %c0_i32_1 = arith.constant 0 : i32
    return %c0_i32, %c0_i32_0 : i32, i32
  }
  func.func @transform_5(%arg0: i32) -> (i32, i32) {
    %c0_i32 = arith.constant 0 : i32
    %c0_i32_0 = arith.constant 0 : i32
    %c0_i32_1 = arith.constant 0 : i32
    return %c0_i32, %c0_i32_0 : i32, i32
  }
  func.func @transform_6(%arg0: i32) -> (i32, i32) {
    %c0_i32 = arith.constant 0 : i32
    %c0_i32_0 = arith.constant 0 : i32
    %c0_i32_1 = arith.constant 0 : i32
    return %c0_i32, %c0_i32_0 : i32, i32
  }
  func.func @transform_7(%arg0: i32) -> (i32, i32) {
    %c0_i32 = arith.constant 0 : i32
    %c0_i32_0 = arith.constant 0 : i32
    %c0_i32_1 = arith.constant 0 : i32
    return %c0_i32, %c0_i32_0 : i32, i32
  }
  func.func @transform_8(%arg0: i32) -> (i32, i32) {
    %c0_i32 = arith.constant 0 : i32
    %c0_i32_0 = arith.constant 0 : i32
    %c0_i32_1 = arith.constant 0 : i32
    return %c0_i32, %c0_i32_0 : i32, i32
  }
  func.func @transform_9(%arg0: i32) -> (i32, i32) {
    %c0_i32 = arith.constant 0 : i32
    %c0_i32_0 = arith.constant 0 : i32
    return %arg0, %c0_i32 : i32, i32
  }
  func.func @transform_10(%arg0: i32) -> (i32, i32) {
    %c0_i32 = arith.constant 0 : i32
    %c0_i32_0 = arith.constant 0 : i32
    return %arg0, %c0_i32 : i32, i32
  }
}

</mosaic_0001>

<llo_original>
// kernel: vamp_prior_forward.1
$region0: #{vamp_prior_forward.1}
  #allocation0 [shape = 'u32[]', space=smem, size = 0x4, offset = 0x4, fixed_abs, tag = 'smem constant byte address 0x4 - core index']
  #allocation1 [shape = 'u32[144,128]{1,0:T(1,128)}', space=vmem, size = 0x12000, scoped, tag = 'internal scratch']
  %s0 = inlined_call_operand.vmem [shape: bf16[256,256], index: 0, kind: input, shape index: {}]
  %s1 = inlined_call_operand.vmem [shape: bf16[256,256], index: 1, kind: input, shape index: {}]
  %s2 = inlined_call_operand.vmem [shape: f32[1,256], index: 2, kind: input, shape index: {}]
  %s3 = inlined_call_operand.vmem [shape: bf16[256,256], index: 3, kind: input, shape index: {}]
  %s4 = inlined_call_operand.vmem [shape: f32[1,256], index: 4, kind: input, shape index: {}]
  %s5 = inlined_call_operand.vmem [shape: bf16[256,128], index: 5, kind: input, shape index: {}]
  %s6 = inlined_call_operand.vmem [shape: f32[1,128], index: 6, kind: input, shape index: {}]
  %s7 = inlined_call_operand.vmem [shape: bf16[256,128], index: 7, kind: input, shape index: {}]
  %s8 = inlined_call_operand.vmem [shape: f32[1,128], index: 8, kind: input, shape index: {}]
  %s9 = inlined_call_operand.hbm [shape: f32[256,128], index: 9, kind: output, shape index: {0}]
  %s10 = inlined_call_operand.hbm [shape: f32[256,128], index: 10, kind: output, shape index: {1}]
  %11 = xla_tuple %s9, %s10
  %s12 = sld [smem:[#allocation0]]
  $region77: #{vamp_prior_forward.1} parent=0
    _
  %s14 = ssub.s32 1, %s12
  %s15 = scalar_select 0, %s14, %s12
  $region1: #{vamp_prior_forward.1} parent=0
    #allocation2 [shape = 'u8[131072]{0}', space=vmem, size = 0x20000, scoped, tag = 'output window, operand 0']
    #allocation3 [shape = 's32[2]{0}', space=sflag, size = 0x8, scoped, tag = 'scoped memory for vamp_prior_forward.1']
    #allocation4 [shape = 'u8[131072]{0}', space=vmem, size = 0x20000, scoped, tag = 'output window, operand 1']
    #allocation5 [shape = 's32[2]{0}', space=sflag, size = 0x8, scoped, tag = 'scoped memory for vamp_prior_forward.1']
    %16 = vsyncpa [#allocation3], 0
    %s17 = scalar_lea.sflag [#allocation3], 1
    %18 = vsyncpa %s17, 0
    %19 = vsyncpa [#allocation5], 0
    %s20 = scalar_lea.sflag [#allocation5], 1
    %21 = vsyncpa %s20, 0
    loop: start=0, step=1, limit=4
    $region2: #{vamp_prior_forward.1} parent=1 // loop_pre_header
      _
    $region3: #{vamp_prior_forward.1} parent=1 // loop_header
      %s23 = sphi 0, %s27
      %p24 = scmp.ge.s32.totalorder %s23, 4
      %s33 = sphi 0, %s35
      %s36 = sphi 0, %s33
      %s37 = sphi 0, %s36
      %s53 = sphi 0, %s37
      %s57 = sphi 0, %s57
      %s59 = sphi 0, %s57
      %s60 = sphi 0, %s59
      %s74 = sphi 0, %s60
      %s78 = sphi 0, %s78
      %s80 = sphi 0, %s78
      %s81 = sphi 0, %s80
      %s95 = sphi 0, %s81
      %s99 = sphi 0, %s99
      %s101 = sphi 0, %s99
      %s102 = sphi 0, %s101
      %s116 = sphi 0, %s102
      %s120 = sphi 0, %s120
      %s122 = sphi 0, %s120
      %s123 = sphi 0, %s122
      %s137 = sphi 0, %s123
      %s141 = sphi 0, %s141
      %s143 = sphi 0, %s141
      %s144 = sphi 0, %s143
      %s158 = sphi 0, %s144
      %s162 = sphi 0, %s162
      %s164 = sphi 0, %s162
      %s165 = sphi 0, %s164
      %s179 = sphi 0, %s165
      %s183 = sphi 0, %s183
      %s185 = sphi 0, %s183
      %s186 = sphi 0, %s185
      %s200 = sphi 0, %s186
      %s204 = sphi 0, %s204
      %s206 = sphi 0, %s204
      %s207 = sphi 0, %s206
      %s221 = sphi 0, %s207
      %s227 = sphi 0, %s229
      %s230 = sphi 0, %s227
      %s231 = sphi 0, %s230
      %s247 = sphi 0, %s231
      %s253 = sphi 0, %s255
      %s256 = sphi 0, %s253
      %s257 = sphi 0, %s256
      %s273 = sphi 0, %s257
    $region4: #{vamp_prior_forward.1} parent=1 // loop_header_branch
      %26 = sbr.rel (%p24) target = $region8
    $region5: #{vamp_prior_forward.1} parent=1 // loop_body
      %s28 = ssub.s32 %s23, 1
      %s29 = ssub.s32 %s23, 2
      %s30 = sadd.s32 %s23, 1
      %s31 = ssub.s32 %s23, %s30
      %p32 = scmp.eq.s32.totalorder %s31, 0
      %s34 = sadd.s32 %s33, 1
      %s35 = scalar_select %p32, %s33, %s34
      %p38 = pneg %p32
      %p39 = scmp.eq.s32.totalorder %s23, 1
      %p40 = por %p38, %p39
      %p41 = scmp.ne.s32.totalorder %s33, %s36
      %p42 = scmp.eq.s32.totalorder %s23, 0
      %p43 = por %p41, %p42
      %p44 = scmp.ne.s32.totalorder %s33, %s36
      %p45 = scmp.eq.s32.totalorder %s28, 1
      %p46 = por %p44, %p45
      %p47 = scmp.ne.s32.totalorder %s36, %s37
      %p48 = scmp.eq.s32.totalorder %s28, 0
      %p49 = por %p47, %p48
      %p50 = scmp.ne.s32.totalorder %s36, %s37
      %p51 = scmp.eq.s32.totalorder %s29, 1
      %p52 = por %p50, %p51
      %p54 = scmp.ne.s32.totalorder %s37, %s53
      %p55 = scmp.eq.s32.totalorder %s29, 0
      %p56 = por %p54, %p55
      %s58 = sadd.s32 %s57, 1
      %p61 = scmp.eq.s32.totalorder %s23, 1
      %p62 = scmp.ne.s32.totalorder %s57, %s59
      %p63 = scmp.eq.s32.totalorder %s23, 0
      %p64 = por %p62, %p63
      %p65 = scmp.ne.s32.totalorder %s57, %s59
      %p66 = scmp.eq.s32.totalorder %s28, 1
      %p67 = por %p65, %p66
      %p68 = scmp.ne.s32.totalorder %s59, %s60
      %p69 = scmp.eq.s32.totalorder %s28, 0
      %p70 = por %p68, %p69
      %p71 = scmp.ne.s32.totalorder %s59, %s60
      %p72 = scmp.eq.s32.totalorder %s29, 1
      %p73 = por %p71, %p72
      %p75 = scmp.ne.s32.totalorder %s60, %s74
      %p76 = scmp.eq.s32.totalorder %s29, 0
      %p77 = por %p75, %p76
      %s79 = sadd.s32 %s78, 1
      %p82 = scmp.eq.s32.totalorder %s23, 1
      %p83 = scmp.ne.s32.totalorder %s78, %s80
      %p84 = scmp.eq.s32.totalorder %s23, 0
      %p85 = por %p83, %p84
      %p86 = scmp.ne.s32.totalorder %s78, %s80
      %p87 = scmp.eq.s32.totalorder %s28, 1
      %p88 = por %p86, %p87
      %p89 = scmp.ne.s32.totalorder %s80, %s81
      %p90 = scmp.eq.s32.totalorder %s28, 0
      %p91 = por %p89, %p90
      %p92 = scmp.ne.s32.totalorder %s80, %s81
      %p93 = scmp.eq.s32.totalorder %s29, 1
      %p94 = por %p92, %p93
      %p96 = scmp.ne.s32.totalorder %s81, %s95
      %p97 = scmp.eq.s32.totalorder %s29, 0
      %p98 = por %p96, %p97
      %s100 = sadd.s32 %s99, 1
      %p103 = scmp.eq.s32.totalorder %s23, 1
      %p104 = scmp.ne.s32.totalorder %s99, %s101
      %p105 = scmp.eq.s32.totalorder %s23, 0
      %p106 = por %p104, %p105
      %p107 = scmp.ne.s32.totalorder %s99, %s101
      %p108 = scmp.eq.s32.totalorder %s28, 1
      %p109 = por %p107, %p108
      %p110 = scmp.ne.s32.totalorder %s101, %s102
      %p111 = scmp.eq.s32.totalorder %s28, 0
      %p112 = por %p110, %p111
      %p113 = scmp.ne.s32.totalorder %s101, %s102
      %p114 = scmp.eq.s32.totalorder %s29, 1
      %p115 = por %p113, %p114
      %p117 = scmp.ne.s32.totalorder %s102, %s116
      %p118 = scmp.eq.s32.totalorder %s29, 0
      %p119 = por %p117, %p118
      %s121 = sadd.s32 %s120, 1
      %p124 = scmp.eq.s32.totalorder %s23, 1
      %p125 = scmp.ne.s32.totalorder %s120, %s122
      %p126 = scmp.eq.s32.totalorder %s23, 0
      %p127 = por %p125, %p126
      %p128 = scmp.ne.s32.totalorder %s120, %s122
      %p129 = scmp.eq.s32.totalorder %s28, 1
      %p130 = por %p128, %p129
      %p131 = scmp.ne.s32.totalorder %s122, %s123
      %p132 = scmp.eq.s32.totalorder %s28, 0
      %p133 = por %p131, %p132
      %p134 = scmp.ne.s32.totalorder %s122, %s123
      %p135 = scmp.eq.s32.totalorder %s29, 1
      %p136 = por %p134, %p135
      %p138 = scmp.ne.s32.totalorder %s123, %s137
      %p139 = scmp.eq.s32.totalorder %s29, 0
      %p140 = por %p138, %p139
      %s142 = sadd.s32 %s141, 1
      %p145 = scmp.eq.s32.totalorder %s23, 1
      %p146 = scmp.ne.s32.totalorder %s141, %s143
      %p147 = scmp.eq.s32.totalorder %s23, 0
      %p148 = por %p146, %p147
      %p149 = scmp.ne.s32.totalorder %s141, %s143
      %p150 = scmp.eq.s32.totalorder %s28, 1
      %p151 = por %p149, %p150
      %p152 = scmp.ne.s32.totalorder %s143, %s144
      %p153 = scmp.eq.s32.totalorder %s28, 0
      %p154 = por %p152, %p153
      %p155 = scmp.ne.s32.totalorder %s143, %s144
      %p156 = scmp.eq.s32.totalorder %s29, 1
      %p157 = por %p155, %p156
      %p159 = scmp.ne.s32.totalorder %s144, %s158
      %p160 = scmp.eq.s32.totalorder %s29, 0
      %p161 = por %p159, %p160
      %s163 = sadd.s32 %s162, 1
      %p166 = scmp.eq.s32.totalorder %s23, 1
      %p167 = scmp.ne.s32.totalorder %s162, %s164
      %p168 = scmp.eq.s32.totalorder %s23, 0
      %p169 = por %p167, %p168
      %p170 = scmp.ne.s32.totalorder %s162, %s164
      %p171 = scmp.eq.s32.totalorder %s28, 1
      %p172 = por %p170, %p171
      %p173 = scmp.ne.s32.totalorder %s164, %s165
      %p174 = scmp.eq.s32.totalorder %s28, 0
      %p175 = por %p173, %p174
      %p176 = scmp.ne.s32.totalorder %s164, %s165
      %p177 = scmp.eq.s32.totalorder %s29, 1
      %p178 = por %p176, %p177
      %p180 = scmp.ne.s32.totalorder %s165, %s179
      %p181 = scmp.eq.s32.totalorder %s29, 0
      %p182 = por %p180, %p181
      %s184 = sadd.s32 %s183, 1
      %p187 = scmp.eq.s32.totalorder %s23, 1
      %p188 = scmp.ne.s32.totalorder %s183, %s185
      %p189 = scmp.eq.s32.totalorder %s23, 0
      %p190 = por %p188, %p189
      %p191 = scmp.ne.s32.totalorder %s183, %s185
      %p192 = scmp.eq.s32.totalorder %s28, 1
      %p193 = por %p191, %p192
      %p194 = scmp.ne.s32.totalorder %s185, %s186
      %p195 = scmp.eq.s32.totalorder %s28, 0
      %p196 = por %p194, %p195
      %p197 = scmp.ne.s32.totalorder %s185, %s186
      %p198 = scmp.eq.s32.totalorder %s29, 1
      %p199 = por %p197, %p198
      %p201 = scmp.ne.s32.totalorder %s186, %s200
      %p202 = scmp.eq.s32.totalorder %s29, 0
      %p203 = por %p201, %p202
      %s205 = sadd.s32 %s204, 1
      %p208 = scmp.eq.s32.totalorder %s23, 1
      %p209 = scmp.ne.s32.totalorder %s204, %s206
      %p210 = scmp.eq.s32.totalorder %s23, 0
      %p211 = por %p209, %p210
      %p212 = scmp.ne.s32.totalorder %s204, %s206
      %p213 = scmp.eq.s32.totalorder %s28, 1
      %p214 = por %p212, %p213
      %p215 = scmp.ne.s32.totalorder %s206, %s207
      %p216 = scmp.eq.s32.totalorder %s28, 0
      %p217 = por %p215, %p216
      %p218 = scmp.ne.s32.totalorder %s206, %s207
      %p219 = scmp.eq.s32.totalorder %s29, 1
      %p220 = por %p218, %p219
      %p222 = scmp.ne.s32.totalorder %s207, %s221
      %p223 = scmp.eq.s32.totalorder %s29, 0
      %p224 = por %p222, %p223
      %s225 = ssub.s32 %s23, %s30
      %p226 = scmp.eq.s32.totalorder %s225, 0
      %s228 = sadd.s32 %s227, 1
      %s229 = scalar_select %p226, %s227, %s228
      %p232 = pneg %p226
      %p233 = scmp.eq.s32.totalorder %s23, 1
      %p234 = por %p232, %p233
      %p235 = scmp.ne.s32.totalorder %s227, %s230
      %p236 = scmp.eq.s32.totalorder %s23, 0
      %p237 = por %p235, %p236
      %p238 = scmp.ne.s32.totalorder %s227, %s230
      %p239 = scmp.eq.s32.totalorder %s28, 1
      %p240 = por %p238, %p239
      %p241 = scmp.ne.s32.totalorder %s230, %s231
      %p242 = scmp.eq.s32.totalorder %s28, 0
      %p243 = por %p241, %p242
      %p244 = scmp.ne.s32.totalorder %s230, %s231
      %p245 = scmp.eq.s32.totalorder %s29, 1
      %p246 = por %p244, %p245
      %p248 = scmp.ne.s32.totalorder %s231, %s247
      %p249 = scmp.eq.s32.totalorder %s29, 0
      %p250 = por %p248, %p249
      %s251 = ssub.s32 %s23, %s30
      %p252 = scmp.eq.s32.totalorder %s251, 0
      %s254 = sadd.s32 %s253, 1
      %s255 = scalar_select %p252, %s253, %s254
      %p258 = pneg %p252
      %p259 = scmp.eq.s32.totalorder %s23, 1
      %p260 = por %p258, %p259
      %p261 = scmp.ne.s32.totalorder %s253, %s256
      %p262 = scmp.eq.s32.totalorder %s23, 0
      %p263 = por %p261, %p262
      %p264 = scmp.ne.s32.totalorder %s253, %s256
      %p265 = scmp.eq.s32.totalorder %s28, 1
      %p266 = por %p264, %p265
      %p267 = scmp.ne.s32.totalorder %s256, %s257
      %p268 = scmp.eq.s32.totalorder %s28, 0
      %p269 = por %p267, %p268
      %p270 = scmp.ne.s32.totalorder %s256, %s257
      %p271 = scmp.eq.s32.totalorder %s29, 1
      %p272 = por %p270, %p271
      %p274 = scmp.ne.s32.totalorder %s257, %s273
      %p275 = scmp.eq.s32.totalorder %s29, 0
      %p276 = por %p274, %p275
      %p277 = scmp.le.s32.totalorder 1, %s23
      %p278 = scmp.lt.s32.totalorder %s23, 3
      %p279 = pnand %p277, %p278
      %p280 = pneg %p279
      // Predicated region
      $region9: #{vamp_prior_forward.1} parent=5 // pred_check
        _
      $region10: #{vamp_prior_forward.1} parent=5 // pred_check_branch
        %282 = sbr.rel (%p279) target = $region12
      $region11: #{vamp_prior_forward.1} parent=5 // pred_region
        %s283 = ssub.s32 %s23, 1
        // Predicated region
        $region13: #{vamp_prior_forward.1} parent=11 // pred_check
          %p284 = pneg %p70
        $region14: #{vamp_prior_forward.1} parent=11 // pred_check_branch
          %286 = sbr.rel (%p284) target = $region16
        $region15: #{vamp_prior_forward.1} parent=11 // pred_region
          _
        $region16: #{vamp_prior_forward.1} parent=11 // pred_fallthru
          _
        // Predicated region
        $region17: #{vamp_prior_forward.1} parent=11 // pred_check
          %p287 = pneg %p91
        $region18: #{vamp_prior_forward.1} parent=11 // pred_check_branch
          %289 = sbr.rel (%p287) target = $region20
        $region19: #{vamp_prior_forward.1} parent=11 // pred_region
          _
        $region20: #{vamp_prior_forward.1} parent=11 // pred_fallthru
          _
        // Predicated region
        $region21: #{vamp_prior_forward.1} parent=11 // pred_check
          %p290 = pneg %p112
        $region22: #{vamp_prior_forward.1} parent=11 // pred_check_branch
          %292 = sbr.rel (%p290) target = $region24
        $region23: #{vamp_prior_forward.1} parent=11 // pred_region
          _
        $region24: #{vamp_prior_forward.1} parent=11 // pred_fallthru
          _
        // Predicated region
        $region25: #{vamp_prior_forward.1} parent=11 // pred_check
          %p293 = pneg %p133
        $region26: #{vamp_prior_forward.1} parent=11 // pred_check_branch
          %295 = sbr.rel (%p293) target = $region28
        $region27: #{vamp_prior_forward.1} parent=11 // pred_region
          _
        $region28: #{vamp_prior_forward.1} parent=11 // pred_fallthru
          _
        // Predicated region
        $region29: #{vamp_prior_forward.1} parent=11 // pred_check
          %p296 = pneg %p154
        $region30: #{vamp_prior_forward.1} parent=11 // pred_check_branch
          %298 = sbr.rel (%p296) target = $region32
        $region31: #{vamp_prior_forward.1} parent=11 // pred_region
          _
        $region32: #{vamp_prior_forward.1} parent=11 // pred_fallthru
          _
        // Predicated region
        $region33: #{vamp_prior_forward.1} parent=11 // pred_check
          %p299 = pneg %p175
        $region34: #{vamp_prior_forward.1} parent=11 // pred_check_branch
          %301 = sbr.rel (%p299) target = $region36
        $region35: #{vamp_prior_forward.1} parent=11 // pred_region
          _
        $region36: #{vamp_prior_forward.1} parent=11 // pred_fallthru
          _
        // Predicated region
        $region37: #{vamp_prior_forward.1} parent=11 // pred_check
          %p302 = pneg %p196
        $region38: #{vamp_prior_forward.1} parent=11 // pred_check_branch
          %304 = sbr.rel (%p302) target = $region40
        $region39: #{vamp_prior_forward.1} parent=11 // pred_region
          _
        $region40: #{vamp_prior_forward.1} parent=11 // pred_fallthru
          _
        // Predicated region
        $region41: #{vamp_prior_forward.1} parent=11 // pred_check
          %p305 = pneg %p217
        $region42: #{vamp_prior_forward.1} parent=11 // pred_check_branch
          %307 = sbr.rel (%p305) target = $region44
        $region43: #{vamp_prior_forward.1} parent=11 // pred_region
          _
        $region44: #{vamp_prior_forward.1} parent=11 // pred_fallthru
          _
      $region12: #{vamp_prior_forward.1} parent=5 // pred_fallthru
        _
      %p308 = scmp.lt.s32.totalorder %s23, 2
      // Predicated region
      $region45: #{vamp_prior_forward.1} parent=5 // pred_check
        %p309 = pneg %p308
      $region46: #{vamp_prior_forward.1} parent=5 // pred_check_branch
        %311 = sbr.rel (%p309) target = $region48
      $region47: #{vamp_prior_forward.1} parent=5 // pred_region
        // Predicated region
        $region49: #{vamp_prior_forward.1} parent=47 // pred_check
          %p312 = pneg %p43
        $region50: #{vamp_prior_forward.1} parent=47 // pred_check_branch
          %314 = sbr.rel (%p312) target = $region52
        $region51: #{vamp_prior_forward.1} parent=47 // pred_region
          %s315 = smul.u32 16, %s23
          %p316 = scmp.lt.s32.totalorder %s315, 31
          %s317 = scalar_select %p316, %s315, 31
          %s318 = smul.addr %s317, 2
          %s319 = smul.addr %s318, 4
          %s320 = scalar_lea.vmem %s0, %s319
          %s321 = smul.u32 16, %s23
        $region52: #{vamp_prior_forward.1} parent=47 // pred_fallthru
          _
      $region48: #{vamp_prior_forward.1} parent=5 // pred_fallthru
        _
      %p322 = scmp.le.s32.totalorder 1, %s23
      %p323 = scmp.lt.s32.totalorder %s23, 3
      %p324 = pnand %p322, %p323
      %p325 = pneg %p324
      // Predicated region
      $region53: #{vamp_prior_forward.1} parent=5 // pred_check
        _
      $region54: #{vamp_prior_forward.1} parent=5 // pred_check_branch
        %327 = sbr.rel (%p324) target = $region56
      $region55: #{vamp_prior_forward.1} parent=5 // pred_region
        %s328 = ssub.s32 %s23, 1
        %s329 = smul.u32 16, %s28
        %p330 = scmp.lt.s32.totalorder %s329, 31
        %s331 = scalar_select %p330, %s329, 31
        %s332 = smul.addr %s331, 2
        %s333 = smul.addr %s332, 4
        %s334 = scalar_lea.vmem %s0, %s333
        %p335 = pneg %p49
        %p336 = pneg %p46
        %p337 = pneg %p70
        %p338 = pneg %p67
        %p339 = pneg %p91
        %p340 = pneg %p88
        %p341 = pneg %p112
        %p342 = pneg %p109
        %p343 = pneg %p133
        %p344 = pneg %p130
        %p345 = pneg %p154
        %p346 = pneg %p151
        %p347 = pneg %p175
        %p348 = pneg %p172
        %p349 = pneg %p196
        %p350 = pneg %p193
        %p351 = pneg %p217
        %p352 = pneg %p214
        %p353 = pneg %p243
        %p354 = pneg %p240
        %s355 = sand.u32 %s230, 1
        %s356 = scalar_lea.sflag [#allocation3], %s355
        %s357 = sand.u32 %s230, 1
        %s358 = smul.addr %s357, 128
        %s359 = scalar_lea.vmem [#allocation2], %s358
        %p360 = pneg %p269
        %p361 = pneg %p266
        %s362 = sand.u32 %s256, 1
        %s363 = scalar_lea.sflag [#allocation5], %s362
        %s364 = sand.u32 %s256, 1
        %s365 = smul.addr %s364, 128
        %s366 = scalar_lea.vmem [#allocation4], %s365
        %s367 = smul.u32 16, %s28
        %p368 = scmp.lt.s32.totalorder %s367, 31
        %s369 = scalar_select %p368, %s367, 31
        %s370 = smul.addr %s369, 2
        %s371 = smul.addr %s370, 4
        %s372 = scalar_lea.vmem %s0, %s371
        %s373 = smul.u32 16, %s28
        %s374 = smul.u32 16, %s28
        %s375 = smul.u32 16, %s28
        %v377 = vld [vmem:[%s372] sm:$0xff]
        %v378 = vld [vmem:[%s372 + $0x8] sm:$0xff]
        %v379 = vld [vmem:[%s372 + $0x10] sm:$0xff]
        %v380 = vld [vmem:[%s372 + $0x18] sm:$0xff]
        %v381 = vld [vmem:[%s372 + $0x20] sm:$0xff]
        %v382 = vld [vmem:[%s372 + $0x28] sm:$0xff]
        %v383 = vld [vmem:[%s372 + $0x30] sm:$0xff]
        %v384 = vld [vmem:[%s372 + $0x38] sm:$0xff]
        %v385 = vld [vmem:[%s372 + $0x40] sm:$0xff]
        %v386 = vld [vmem:[%s372 + $0x48] sm:$0xff]
        %v387 = vld [vmem:[%s372 + $0x50] sm:$0xff]
        %v388 = vld [vmem:[%s372 + $0x58] sm:$0xff]
        %v389 = vld [vmem:[%s372 + $0x60] sm:$0xff]
        %v390 = vld [vmem:[%s372 + $0x68] sm:$0xff]
        %v391 = vld [vmem:[%s372 + $0x70] sm:$0xff]
        %v392 = vld [vmem:[%s372 + $0x78] sm:$0xff]
        %v393 = vld [vmem:[%s1] sm:$0xff]
        %v394 = vld [vmem:[%s1 + $0x8] sm:$0xff]
        %v395 = vld [vmem:[%s1 + $0x10] sm:$0xff]
        %v396 = vld [vmem:[%s1 + $0x18] sm:$0xff]
        %v397 = vld [vmem:[%s1 + $0x20] sm:$0xff]
        %v398 = vld [vmem:[%s1 + $0x28] sm:$0xff]
        %v399 = vld [vmem:[%s1 + $0x30] sm:$0xff]
        %v400 = vld [vmem:[%s1 + $0x38] sm:$0xff]
        %v401 = vld [vmem:[%s1 + $0x40] sm:$0xff]
        %v402 = vld [vmem:[%s1 + $0x48] sm:$0xff]
        %v403 = vld [vmem:[%s1 + $0x50] sm:$0xff]
        %v404 = vld [vmem:[%s1 + $0x58] sm:$0xff]
        %v405 = vld [vmem:[%s1 + $0x60] sm:$0xff]
        %v406 = vld [vmem:[%s1 + $0x68] sm:$0xff]
        %v407 = vld [vmem:[%s1 + $0x70] sm:$0xff]
        %v408 = vld [vmem:[%s1 + $0x78] sm:$0xff]
        %v409 = vld [vmem:[%s1 + $0x80] sm:$0xff]
        %v410 = vld [vmem:[%s1 + $0x88] sm:$0xff]
        %v411 = vld [vmem:[%s1 + $0x90] sm:$0xff]
        %v412 = vld [vmem:[%s1 + $0x98] sm:$0xff]
        %v413 = vld [vmem:[%s1 + $0xa0] sm:$0xff]
        %v414 = vld [vmem:[%s1 + $0xa8] sm:$0xff]
        %v415 = vld [vmem:[%s1 + $0xb0] sm:$0xff]
        %v416 = vld [vmem:[%s1 + $0xb8] sm:$0xff]
        %v417 = vld [vmem:[%s1 + $0xc0] sm:$0xff]
        %v418 = vld [vmem:[%s1 + $0xc8] sm:$0xff]
        %v419 = vld [vmem:[%s1 + $0xd0] sm:$0xff]
        %v420 = vld [vmem:[%s1 + $0xd8] sm:$0xff]
        %v421 = vld [vmem:[%s1 + $0xe0] sm:$0xff]
        %v422 = vld [vmem:[%s1 + $0xe8] sm:$0xff]
        %v423 = vld [vmem:[%s1 + $0xf0] sm:$0xff]
        %v424 = vld [vmem:[%s1 + $0xf8] sm:$0xff]
        %v425 = vld [vmem:[%s2] sm:$0x3]
        %v427 = vlaneseq
        %v428 = vshrl.u32 %v427, 7
        %v429 = vsub.s32 0, %v428
        %v430 = vrot.slane %v425, %v429
        %v431 = vlaneseq
        %v432 = vshrl.u32 %v431, 7
        %v433 = vsub.s32 1, %v432
        %v434 = vrot.slane %v425, %v433
        %v453 = vunpack.c.l.b16 %v377
        %v454 = vunpack.c.h.b16 %v377
        %v455 = vunpack.c.l.b16 %v378
        %v456 = vunpack.c.h.b16 %v378
        %v457 = vunpack.c.l.b16 %v379
        %v458 = vunpack.c.h.b16 %v379
        %v459 = vunpack.c.l.b16 %v380
        %v460 = vunpack.c.h.b16 %v380
        %v461 = vunpack.c.l.b16 %v381
        %v462 = vunpack.c.h.b16 %v381
        %v463 = vunpack.c.l.b16 %v382
        %v464 = vunpack.c.h.b16 %v382
        %v465 = vunpack.c.l.b16 %v383
        %v466 = vunpack.c.h.b16 %v383
        %v467 = vunpack.c.l.b16 %v384
        %v468 = vunpack.c.h.b16 %v384
        %v469 = vunpack.c.l.b16 %v385
        %v470 = vunpack.c.h.b16 %v385
        %v471 = vunpack.c.l.b16 %v386
        %v472 = vunpack.c.h.b16 %v386
        %v473 = vunpack.c.l.b16 %v387
        %v474 = vunpack.c.h.b16 %v387
        %v475 = vunpack.c.l.b16 %v388
        %v476 = vunpack.c.h.b16 %v388
        %v477 = vunpack.c.l.b16 %v389
        %v478 = vunpack.c.h.b16 %v389
        %v479 = vunpack.c.l.b16 %v390
        %v480 = vunpack.c.h.b16 %v390
        %v481 = vunpack.c.l.b16 %v391
        %v482 = vunpack.c.h.b16 %v391
        %v483 = vunpack.c.l.b16 %v392
        %v484 = vunpack.c.h.b16 %v392
        %v485 = vpack.c.b16 %v455, %v453
        %v486 = vpack.c.b16 %v456, %v454
        %v487 = vpack.c.b16 %v459, %v457
        %v488 = vpack.c.b16 %v460, %v458
        %v489 = vpack.c.b16 %v463, %v461
        %v490 = vpack.c.b16 %v464, %v462
        %v491 = vpack.c.b16 %v467, %v465
        %v492 = vpack.c.b16 %v468, %v466
        %v493 = vpack.c.b16 %v471, %v469
        %v494 = vpack.c.b16 %v472, %v470
        %v495 = vpack.c.b16 %v475, %v473
        %v496 = vpack.c.b16 %v476, %v474
        %v497 = vpack.c.b16 %v479, %v477
        %v498 = vpack.c.b16 %v480, %v478
        %v499 = vpack.c.b16 %v483, %v481
        %v500 = vpack.c.b16 %v484, %v482
        %v549 = vunpack.c.l.b16 %v393
        %v550 = vunpack.c.h.b16 %v393
        %v551 = vunpack.c.l.b16 %v394
        %v552 = vunpack.c.h.b16 %v394
        %v553 = vunpack.c.l.b16 %v395
        %v554 = vunpack.c.h.b16 %v395
        %v555 = vunpack.c.l.b16 %v396
        %v556 = vunpack.c.h.b16 %v396
        %v557 = vunpack.c.l.b16 %v397
        %v558 = vunpack.c.h.b16 %v397
        %v559 = vunpack.c.l.b16 %v398
        %v560 = vunpack.c.h.b16 %v398
        %v561 = vunpack.c.l.b16 %v399
        %v562 = vunpack.c.h.b16 %v399
        %v563 = vunpack.c.l.b16 %v400
        %v564 = vunpack.c.h.b16 %v400
        %v565 = vunpack.c.l.b16 %v401
        %v566 = vunpack.c.h.b16 %v401
        %v567 = vunpack.c.l.b16 %v402
        %v568 = vunpack.c.h.b16 %v402
        %v569 = vunpack.c.l.b16 %v403
        %v570 = vunpack.c.h.b16 %v403
        %v571 = vunpack.c.l.b16 %v404
        %v572 = vunpack.c.h.b16 %v404
        %v573 = vunpack.c.l.b16 %v405
        %v574 = vunpack.c.h.b16 %v405
        %v575 = vunpack.c.l.b16 %v406
        %v576 = vunpack.c.h.b16 %v406
        %v577 = vunpack.c.l.b16 %v407
        %v578 = vunpack.c.h.b16 %v407
        %v579 = vunpack.c.l.b16 %v408
        %v580 = vunpack.c.h.b16 %v408
        %v581 = vunpack.c.l.b16 %v409
        %v582 = vunpack.c.h.b16 %v409
        %v583 = vunpack.c.l.b16 %v410
        %v584 = vunpack.c.h.b16 %v410
        %v585 = vunpack.c.l.b16 %v411
        %v586 = vunpack.c.h.b16 %v411
        %v587 = vunpack.c.l.b16 %v412
        %v588 = vunpack.c.h.b16 %v412
        %v589 = vunpack.c.l.b16 %v413
        %v590 = vunpack.c.h.b16 %v413
        %v591 = vunpack.c.l.b16 %v414
        %v592 = vunpack.c.h.b16 %v414
        %v593 = vunpack.c.l.b16 %v415
        %v594 = vunpack.c.h.b16 %v415
        %v595 = vunpack.c.l.b16 %v416
        %v596 = vunpack.c.h.b16 %v416
        %v597 = vunpack.c.l.b16 %v417
        %v598 = vunpack.c.h.b16 %v417
        %v599 = vunpack.c.l.b16 %v418
        %v600 = vunpack.c.h.b16 %v418
        %v601 = vunpack.c.l.b16 %v419
        %v602 = vunpack.c.h.b16 %v419
        %v603 = vunpack.c.l.b16 %v420
        %v604 = vunpack.c.h.b16 %v420
        %v605 = vunpack.c.l.b16 %v421
        %v606 = vunpack.c.h.b16 %v421
        %v607 = vunpack.c.l.b16 %v422
        %v608 = vunpack.c.h.b16 %v422
        %v609 = vunpack.c.l.b16 %v423
        %v610 = vunpack.c.h.b16 %v423
        %v611 = vunpack.c.l.b16 %v424
        %v612 = vunpack.c.h.b16 %v424
        %v613 = vpack.c.b16 %v551, %v549
        %v614 = vpack.c.b16 %v552, %v550
        %v615 = vpack.c.b16 %v555, %v553
        %v616 = vpack.c.b16 %v556, %v554
        %v617 = vpack.c.b16 %v559, %v557
        %v618 = vpack.c.b16 %v560, %v558
        %v619 = vpack.c.b16 %v563, %v561
        %v620 = vpack.c.b16 %v564, %v562
        %v621 = vpack.c.b16 %v567, %v565
        %v622 = vpack.c.b16 %v568, %v566
        %v623 = vpack.c.b16 %v571, %v569
        %v624 = vpack.c.b16 %v572, %v570
        %v625 = vpack.c.b16 %v575, %v573
        %v626 = vpack.c.b16 %v576, %v574
        %v627 = vpack.c.b16 %v579, %v577
        %v628 = vpack.c.b16 %v580, %v578
        %v629 = vpack.c.b16 %v583, %v581
        %v630 = vpack.c.b16 %v584, %v582
        %v631 = vpack.c.b16 %v587, %v585
        %v632 = vpack.c.b16 %v588, %v586
        %v633 = vpack.c.b16 %v591, %v589
        %v634 = vpack.c.b16 %v592, %v590
        %v635 = vpack.c.b16 %v595, %v593
        %v636 = vpack.c.b16 %v596, %v594
        %v637 = vpack.c.b16 %v599, %v597
        %v638 = vpack.c.b16 %v600, %v598
        %v639 = vpack.c.b16 %v603, %v601
        %v640 = vpack.c.b16 %v604, %v602
        %v641 = vpack.c.b16 %v607, %v605
        %v642 = vpack.c.b16 %v608, %v606
        %v643 = vpack.c.b16 %v611, %v609
        %v644 = vpack.c.b16 %v612, %v610
        %677 = vmatprep.subr.bf16.mxu0 %v628
        %678 = vmatpush1.bf16.msra.mxu0 %v627
        %679 = vmatprep.subr.bf16.mxu0 %v626
        %680 = vmatpush1.bf16.msra.mxu0 %v625
        %681 = vmatprep.subr.bf16.mxu0 %v624
        %682 = vmatpush1.bf16.msra.mxu0 %v623
        %683 = vmatprep.subr.bf16.mxu0 %v622
        %684 = vmatpush1.bf16.msra.mxu0 %v621
        %685 = vmatprep.subr.bf16.mxu0 %v620
        %686 = vmatpush1.bf16.msra.mxu0 %v619
        %687 = vmatprep.subr.bf16.mxu0 %v618
        %688 = vmatpush1.bf16.msra.mxu0 %v617
        %689 = vmatprep.subr.bf16.mxu0 %v616
        %690 = vmatpush1.bf16.msra.mxu0 %v615
        %691 = vmatprep.subr.bf16.mxu0 %v614
        %692 = vmatpush1.bf16.msra.mxu0 %v613
        %693 = vmatprep.subr.bf16.mxu0 %v644
        %694 = vmatpush2.bf16.msra.mxu0 %v643
        %695 = vmatprep.subr.bf16.mxu0 %v642
        %696 = vmatpush2.bf16.msra.mxu0 %v641
        %697 = vmatprep.subr.bf16.mxu0 %v640
        %698 = vmatpush2.bf16.msra.mxu0 %v639
        %699 = vmatprep.subr.bf16.mxu0 %v638
        %700 = vmatpush2.bf16.msra.mxu0 %v637
        %701 = vmatprep.subr.bf16.mxu0 %v636
        %702 = vmatpush2.bf16.msra.mxu0 %v635
        %703 = vmatprep.subr.bf16.mxu0 %v634
        %704 = vmatpush2.bf16.msra.mxu0 %v633
        %705 = vmatprep.subr.bf16.mxu0 %v632
        %706 = vmatpush2.bf16.msra.mxu0 %v631
        %707 = vmatprep.subr.bf16.mxu0 %v630
        %708 = vmatpush2.bf16.msra.mxu0 %v629
        %709 = vmatprep.mubr.bf16.mxu0 %v486
        %710 = vmatmul.mubr.bf16.gmra.mxu0 %v485
        %v711 = vpop.f32.mrf.mxu0
        %v712 = vadd.f32 %v430, %v711
        %v713 = vpop.f32.mrf.mxu0
        %v714 = vadd.f32 %v434, %v713
        %v715 = vpop.f32.mrf.mxu0
        %v716 = vadd.f32 %v430, %v715
        %v717 = vpop.f32.mrf.mxu0
        %v718 = vadd.f32 %v434, %v717
        %719 = vmatprep.mubr.bf16.mxu0 %v488
        %720 = vmatmul.mubr.bf16.gmra.mxu0 %v487
        %v721 = vpop.f32.mrf.mxu0
        %v722 = vadd.f32 %v430, %v721
        %v723 = vpop.f32.mrf.mxu0
        %v724 = vadd.f32 %v434, %v723
        %v725 = vpop.f32.mrf.mxu0
        %v726 = vadd.f32 %v430, %v725
        %v727 = vpop.f32.mrf.mxu0
        %v728 = vadd.f32 %v434, %v727
        %729 = vmatprep.mubr.bf16.mxu0 %v490
        %730 = vmatmul.mubr.bf16.gmra.mxu0 %v489
        %v731 = vpop.f32.mrf.mxu0
        %v732 = vadd.f32 %v430, %v731
        %v733 = vpop.f32.mrf.mxu0
        %v734 = vadd.f32 %v434, %v733
        %v735 = vpop.f32.mrf.mxu0
        %v736 = vadd.f32 %v430, %v735
        %v737 = vpop.f32.mrf.mxu0
        %v738 = vadd.f32 %v434, %v737
        %739 = vmatprep.mubr.bf16.mxu0 %v492
        %740 = vmatmul.mubr.bf16.gmra.mxu0 %v491
        %v741 = vpop.f32.mrf.mxu0
        %v742 = vadd.f32 %v430, %v741
        %v743 = vpop.f32.mrf.mxu0
        %v744 = vadd.f32 %v434, %v743
        %v745 = vpop.f32.mrf.mxu0
        %v746 = vadd.f32 %v430, %v745
        %v747 = vpop.f32.mrf.mxu0
        %v748 = vadd.f32 %v434, %v747
        %749 = vmatprep.mubr.bf16.mxu0 %v494
        %750 = vmatmul.mubr.bf16.gmra.mxu0 %v493
        %v751 = vpop.f32.mrf.mxu0
        %v752 = vadd.f32 %v430, %v751
        %v753 = vpop.f32.mrf.mxu0
        %v754 = vadd.f32 %v434, %v753
        %v755 = vpop.f32.mrf.mxu0
        %v756 = vadd.f32 %v430, %v755
        %v757 = vpop.f32.mrf.mxu0
        %v758 = vadd.f32 %v434, %v757
        %759 = vmatprep.mubr.bf16.mxu0 %v496
        %760 = vmatmul.mubr.bf16.gmra.mxu0 %v495
        %v761 = vpop.f32.mrf.mxu0
        %v762 = vadd.f32 %v430, %v761
        %v763 = vpop.f32.mrf.mxu0
        %v764 = vadd.f32 %v434, %v763
        %v765 = vpop.f32.mrf.mxu0
        %v766 = vadd.f32 %v430, %v765
        %v767 = vpop.f32.mrf.mxu0
        %v768 = vadd.f32 %v434, %v767
        %769 = vmatprep.mubr.bf16.mxu0 %v498
        %770 = vmatmul.mubr.bf16.gmra.mxu0 %v497
        %v771 = vpop.f32.mrf.mxu0
        %v772 = vadd.f32 %v430, %v771
        %v773 = vpop.f32.mrf.mxu0
        %v774 = vadd.f32 %v434, %v773
        %v775 = vpop.f32.mrf.mxu0
        %v776 = vadd.f32 %v430, %v775
        %v777 = vpop.f32.mrf.mxu0
        %v778 = vadd.f32 %v434, %v777
        %779 = vmatprep.mubr.bf16.mxu0 %v500
        %780 = vmatmul.mubr.bf16.gmra.mxu0 %v499
        %v781 = vpop.f32.mrf.mxu0
        %v782 = vadd.f32 %v430, %v781
        %v783 = vpop.f32.mrf.mxu0
        %v784 = vadd.f32 %v434, %v783
        %v785 = vpop.f32.mrf.mxu0
        %v786 = vadd.f32 %v430, %v785
        %v787 = vpop.f32.mrf.mxu0
        %v788 = vadd.f32 %v434, %v787
        %789 = vdwg.mxu0
        %v790 = vmax.f32 %v712, 0.0
        %v791 = vmax.f32 %v714, 0.0
        %v792 = vmax.f32 %v716, 0.0
        %v793 = vmax.f32 %v718, 0.0
        %v794 = vmax.f32 %v722, 0.0
        %v795 = vmax.f32 %v724, 0.0
        %v796 = vmax.f32 %v726, 0.0
        %v797 = vmax.f32 %v728, 0.0
        %v798 = vmax.f32 %v732, 0.0
        %v799 = vmax.f32 %v734, 0.0
        %v800 = vmax.f32 %v736, 0.0
        %v801 = vmax.f32 %v738, 0.0
        %v802 = vmax.f32 %v742, 0.0
        %v803 = vmax.f32 %v744, 0.0
        %v804 = vmax.f32 %v746, 0.0
        %v805 = vmax.f32 %v748, 0.0
        %v806 = vmax.f32 %v752, 0.0
        %v807 = vmax.f32 %v754, 0.0
        %v808 = vmax.f32 %v756, 0.0
        %v809 = vmax.f32 %v758, 0.0
        %v810 = vmax.f32 %v762, 0.0
        %v811 = vmax.f32 %v764, 0.0
        %v812 = vmax.f32 %v766, 0.0
        %v813 = vmax.f32 %v768, 0.0
        %v814 = vmax.f32 %v772, 0.0
        %v815 = vmax.f32 %v774, 0.0
        %v816 = vmax.f32 %v776, 0.0
        %v817 = vmax.f32 %v778, 0.0
        %v818 = vmax.f32 %v782, 0.0
        %v819 = vmax.f32 %v784, 0.0
        %v820 = vmax.f32 %v786, 0.0
        %v821 = vmax.f32 %v788, 0.0
        %v822 = vpack.c.bf16 %v792, %v790
        %v823 = vpack.c.bf16 %v793, %v791
        %v824 = vpack.c.bf16 %v796, %v794
        %v825 = vpack.c.bf16 %v797, %v795
        %v826 = vpack.c.bf16 %v800, %v798
        %v827 = vpack.c.bf16 %v801, %v799
        %v828 = vpack.c.bf16 %v804, %v802
        %v829 = vpack.c.bf16 %v805, %v803
        %v830 = vpack.c.bf16 %v808, %v806
        %v831 = vpack.c.bf16 %v809, %v807
        %v832 = vpack.c.bf16 %v812, %v810
        %v833 = vpack.c.bf16 %v813, %v811
        %v834 = vpack.c.bf16 %v816, %v814
        %v835 = vpack.c.bf16 %v817, %v815
        %v836 = vpack.c.bf16 %v820, %v818
        %v837 = vpack.c.bf16 %v821, %v819
        %v838 = vld [vmem:[%s3] sm:$0xff]
        %v839 = vld [vmem:[%s3 + $0x8] sm:$0xff]
        %v840 = vld [vmem:[%s3 + $0x10] sm:$0xff]
        %v841 = vld [vmem:[%s3 + $0x18] sm:$0xff]
        %v842 = vld [vmem:[%s3 + $0x20] sm:$0xff]
        %v843 = vld [vmem:[%s3 + $0x28] sm:$0xff]
        %v844 = vld [vmem:[%s3 + $0x30] sm:$0xff]
        %v845 = vld [vmem:[%s3 + $0x38] sm:$0xff]
        %v846 = vld [vmem:[%s3 + $0x40] sm:$0xff]
        %v847 = vld [vmem:[%s3 + $0x48] sm:$0xff]
        %v848 = vld [vmem:[%s3 + $0x50] sm:$0xff]
        %v849 = vld [vmem:[%s3 + $0x58] sm:$0xff]
        %v850 = vld [vmem:[%s3 + $0x60] sm:$0xff]
        %v851 = vld [vmem:[%s3 + $0x68] sm:$0xff]
        %v852 = vld [vmem:[%s3 + $0x70] sm:$0xff]
        %v853 = vld [vmem:[%s3 + $0x78] sm:$0xff]
        %v854 = vld [vmem:[%s3 + $0x80] sm:$0xff]
        %v855 = vld [vmem:[%s3 + $0x88] sm:$0xff]
        %v856 = vld [vmem:[%s3 + $0x90] sm:$0xff]
        %v857 = vld [vmem:[%s3 + $0x98] sm:$0xff]
        %v858 = vld [vmem:[%s3 + $0xa0] sm:$0xff]
        %v859 = vld [vmem:[%s3 + $0xa8] sm:$0xff]
        %v860 = vld [vmem:[%s3 + $0xb0] sm:$0xff]
        %v861 = vld [vmem:[%s3 + $0xb8] sm:$0xff]
        %v862 = vld [vmem:[%s3 + $0xc0] sm:$0xff]
        %v863 = vld [vmem:[%s3 + $0xc8] sm:$0xff]
        %v864 = vld [vmem:[%s3 + $0xd0] sm:$0xff]
        %v865 = vld [vmem:[%s3 + $0xd8] sm:$0xff]
        %v866 = vld [vmem:[%s3 + $0xe0] sm:$0xff]
        %v867 = vld [vmem:[%s3 + $0xe8] sm:$0xff]
        %v868 = vld [vmem:[%s3 + $0xf0] sm:$0xff]
        %v869 = vld [vmem:[%s3 + $0xf8] sm:$0xff]
        %v870 = vld [vmem:[%s4] sm:$0x3]
        %v872 = vlaneseq
        %v873 = vshrl.u32 %v872, 7
        %v874 = vsub.s32 0, %v873
        %v875 = vrot.slane %v870, %v874
        %v876 = vlaneseq
        %v877 = vshrl.u32 %v876, 7
        %v878 = vsub.s32 1, %v877
        %v879 = vrot.slane %v870, %v878
        %v914 = vunpack.c.l.b16 %v838
        %v915 = vunpack.c.h.b16 %v838
        %v916 = vunpack.c.l.b16 %v839
        %v917 = vunpack.c.h.b16 %v839
        %v918 = vunpack.c.l.b16 %v840
        %v919 = vunpack.c.h.b16 %v840
        %v920 = vunpack.c.l.b16 %v841
        %v921 = vunpack.c.h.b16 %v841
        %v922 = vunpack.c.l.b16 %v842
        %v923 = vunpack.c.h.b16 %v842
        %v924 = vunpack.c.l.b16 %v843
        %v925 = vunpack.c.h.b16 %v843
        %v926 = vunpack.c.l.b16 %v844
        %v927 = vunpack.c.h.b16 %v844
        %v928 = vunpack.c.l.b16 %v845
        %v929 = vunpack.c.h.b16 %v845
        %v930 = vunpack.c.l.b16 %v846
        %v931 = vunpack.c.h.b16 %v846
        %v932 = vunpack.c.l.b16 %v847
        %v933 = vunpack.c.h.b16 %v847
        %v934 = vunpack.c.l.b16 %v848
        %v935 = vunpack.c.h.b16 %v848
        %v936 = vunpack.c.l.b16 %v849
        %v937 = vunpack.c.h.b16 %v849
        %v938 = vunpack.c.l.b16 %v850
        %v939 = vunpack.c.h.b16 %v850
        %v940 = vunpack.c.l.b16 %v851
        %v941 = vunpack.c.h.b16 %v851
        %v942 = vunpack.c.l.b16 %v852
        %v943 = vunpack.c.h.b16 %v852
        %v944 = vunpack.c.l.b16 %v853
        %v945 = vunpack.c.h.b16 %v853
        %v946 = vunpack.c.l.b16 %v854
        %v947 = vunpack.c.h.b16 %v854
        %v948 = vunpack.c.l.b16 %v855
        %v949 = vunpack.c.h.b16 %v855
        %v950 = vunpack.c.l.b16 %v856
        %v951 = vunpack.c.h.b16 %v856
        %v952 = vunpack.c.l.b16 %v857
        %v953 = vunpack.c.h.b16 %v857
        %v954 = vunpack.c.l.b16 %v858
        %v955 = vunpack.c.h.b16 %v858
        %v956 = vunpack.c.l.b16 %v859
        %v957 = vunpack.c.h.b16 %v859
        %v958 = vunpack.c.l.b16 %v860
        %v959 = vunpack.c.h.b16 %v860
        %v960 = vunpack.c.l.b16 %v861
        %v961 = vunpack.c.h.b16 %v861
        %v962 = vunpack.c.l.b16 %v862
        %v963 = vunpack.c.h.b16 %v862
        %v964 = vunpack.c.l.b16 %v863
        %v965 = vunpack.c.h.b16 %v863
        %v966 = vunpack.c.l.b16 %v864
        %v967 = vunpack.c.h.b16 %v864
        %v968 = vunpack.c.l.b16 %v865
        %v969 = vunpack.c.h.b16 %v865
        %v970 = vunpack.c.l.b16 %v866
        %v971 = vunpack.c.h.b16 %v866
        %v972 = vunpack.c.l.b16 %v867
        %v973 = vunpack.c.h.b16 %v867
        %v974 = vunpack.c.l.b16 %v868
        %v975 = vunpack.c.h.b16 %v868
        %v976 = vunpack.c.l.b16 %v869
        %v977 = vunpack.c.h.b16 %v869
        %v978 = vpack.c.b16 %v916, %v914
        %v979 = vpack.c.b16 %v917, %v915
        %v980 = vpack.c.b16 %v920, %v918
        %v981 = vpack.c.b16 %v921, %v919
        %v982 = vpack.c.b16 %v924, %v922
        %v983 = vpack.c.b16 %v925, %v923
        %v984 = vpack.c.b16 %v928, %v926
        %v985 = vpack.c.b16 %v929, %v927
        %v986 = vpack.c.b16 %v932, %v930
        %v987 = vpack.c.b16 %v933, %v931
        %v988 = vpack.c.b16 %v936, %v934
        %v989 = vpack.c.b16 %v937, %v935
        %v990 = vpack.c.b16 %v940, %v938
        %v991 = vpack.c.b16 %v941, %v939
        %v992 = vpack.c.b16 %v944, %v942
        %v993 = vpack.c.b16 %v945, %v943
        %v994 = vpack.c.b16 %v948, %v946
        %v995 = vpack.c.b16 %v949, %v947
        %v996 = vpack.c.b16 %v952, %v950
        %v997 = vpack.c.b16 %v953, %v951
        %v998 = vpack.c.b16 %v956, %v954
        %v999 = vpack.c.b16 %v957, %v955
        %v1000 = vpack.c.b16 %v960, %v958
        %v1001 = vpack.c.b16 %v961, %v959
        %v1002 = vpack.c.b16 %v964, %v962
        %v1003 = vpack.c.b16 %v965, %v963
        %v1004 = vpack.c.b16 %v968, %v966
        %v1005 = vpack.c.b16 %v969, %v967
        %v1006 = vpack.c.b16 %v972, %v970
        %v1007 = vpack.c.b16 %v973, %v971
        %v1008 = vpack.c.b16 %v976, %v974
        %v1009 = vpack.c.b16 %v977, %v975
        %1042 = vmatprep.subr.bf16.mxu0 %v993
        %1043 = vmatpush1.bf16.msra.mxu0 %v992
        %1044 = vmatprep.subr.bf16.mxu0 %v991
        %1045 = vmatpush1.bf16.msra.mxu0 %v990
        %1046 = vmatprep.subr.bf16.mxu0 %v989
        %1047 = vmatpush1.bf16.msra.mxu0 %v988
        %1048 = vmatprep.subr.bf16.mxu0 %v987
        %1049 = vmatpush1.bf16.msra.mxu0 %v986
        %1050 = vmatprep.subr.bf16.mxu0 %v985
        %1051 = vmatpush1.bf16.msra.mxu0 %v984
        %1052 = vmatprep.subr.bf16.mxu0 %v983
        %1053 = vmatpush1.bf16.msra.mxu0 %v982
        %1054 = vmatprep.subr.bf16.mxu0 %v981
        %1055 = vmatpush1.bf16.msra.mxu0 %v980
        %1056 = vmatprep.subr.bf16.mxu0 %v979
        %1057 = vmatpush1.bf16.msra.mxu0 %v978
        %1058 = vmatprep.subr.bf16.mxu0 %v1009
        %1059 = vmatpush2.bf16.msra.mxu0 %v1008
        %1060 = vmatprep.subr.bf16.mxu0 %v1007
        %1061 = vmatpush2.bf16.msra.mxu0 %v1006
        %1062 = vmatprep.subr.bf16.mxu0 %v1005
        %1063 = vmatpush2.bf16.msra.mxu0 %v1004
        %1064 = vmatprep.subr.bf16.mxu0 %v1003
        %1065 = vmatpush2.bf16.msra.mxu0 %v1002
        %1066 = vmatprep.subr.bf16.mxu0 %v1001
        %1067 = vmatpush2.bf16.msra.mxu0 %v1000
        %1068 = vmatprep.subr.bf16.mxu0 %v999
        %1069 = vmatpush2.bf16.msra.mxu0 %v998
        %1070 = vmatprep.subr.bf16.mxu0 %v997
        %1071 = vmatpush2.bf16.msra.mxu0 %v996
        %1072 = vmatprep.subr.bf16.mxu0 %v995
        %1073 = vmatpush2.bf16.msra.mxu0 %v994
        %1074 = vmatprep.mubr.bf16.mxu0 %v823
        %1075 = vmatmul.mubr.bf16.gmra.mxu0 %v822
        %v1076 = vpop.f32.mrf.mxu0
        %v1077 = vadd.f32 %v875, %v1076
        %v1078 = vpop.f32.mrf.mxu0
        %v1079 = vadd.f32 %v879, %v1078
        %v1080 = vpop.f32.mrf.mxu0
        %v1081 = vadd.f32 %v875, %v1080
        %v1082 = vpop.f32.mrf.mxu0
        %v1083 = vadd.f32 %v879, %v1082
        %1084 = vmatprep.mubr.bf16.mxu0 %v825
        %1085 = vmatmul.mubr.bf16.gmra.mxu0 %v824
        %v1086 = vpop.f32.mrf.mxu0
        %v1087 = vadd.f32 %v875, %v1086
        %v1088 = vpop.f32.mrf.mxu0
        %v1089 = vadd.f32 %v879, %v1088
        %v1090 = vpop.f32.mrf.mxu0
        %v1091 = vadd.f32 %v875, %v1090
        %v1092 = vpop.f32.mrf.mxu0
        %v1093 = vadd.f32 %v879, %v1092
        %1094 = vmatprep.mubr.bf16.mxu0 %v827
        %1095 = vmatmul.mubr.bf16.gmra.mxu0 %v826
        %v1096 = vpop.f32.mrf.mxu0
        %v1097 = vadd.f32 %v875, %v1096
        %v1098 = vpop.f32.mrf.mxu0
        %v1099 = vadd.f32 %v879, %v1098
        %v1100 = vpop.f32.mrf.mxu0
        %v1101 = vadd.f32 %v875, %v1100
        %v1102 = vpop.f32.mrf.mxu0
        %v1103 = vadd.f32 %v879, %v1102
        %1104 = vmatprep.mubr.bf16.mxu0 %v829
        %1105 = vmatmul.mubr.bf16.gmra.mxu0 %v828
        %v1106 = vpop.f32.mrf.mxu0
        %v1107 = vadd.f32 %v875, %v1106
        %v1108 = vpop.f32.mrf.mxu0
        %v1109 = vadd.f32 %v879, %v1108
        %v1110 = vpop.f32.mrf.mxu0
        %v1111 = vadd.f32 %v875, %v1110
        %v1112 = vpop.f32.mrf.mxu0
        %v1113 = vadd.f32 %v879, %v1112
        %1114 = vmatprep.mubr.bf16.mxu0 %v831
        %1115 = vmatmul.mubr.bf16.gmra.mxu0 %v830
        %v1116 = vpop.f32.mrf.mxu0
        %v1117 = vadd.f32 %v875, %v1116
        %v1118 = vpop.f32.mrf.mxu0
        %v1119 = vadd.f32 %v879, %v1118
        %v1120 = vpop.f32.mrf.mxu0
        %v1121 = vadd.f32 %v875, %v1120
        %v1122 = vpop.f32.mrf.mxu0
        %v1123 = vadd.f32 %v879, %v1122
        %1124 = vmatprep.mubr.bf16.mxu0 %v833
        %1125 = vmatmul.mubr.bf16.gmra.mxu0 %v832
        %v1126 = vpop.f32.mrf.mxu0
        %v1127 = vadd.f32 %v875, %v1126
        %v1128 = vpop.f32.mrf.mxu0
        %v1129 = vadd.f32 %v879, %v1128
        %v1130 = vpop.f32.mrf.mxu0
        %v1131 = vadd.f32 %v875, %v1130
        %v1132 = vpop.f32.mrf.mxu0
        %v1133 = vadd.f32 %v879, %v1132
        %1134 = vmatprep.mubr.bf16.mxu0 %v835
        %1135 = vmatmul.mubr.bf16.gmra.mxu0 %v834
        %v1136 = vpop.f32.mrf.mxu0
        %v1137 = vadd.f32 %v875, %v1136
        %v1138 = vpop.f32.mrf.mxu0
        %v1139 = vadd.f32 %v879, %v1138
        %v1140 = vpop.f32.mrf.mxu0
        %v1141 = vadd.f32 %v875, %v1140
        %v1142 = vpop.f32.mrf.mxu0
        %v1143 = vadd.f32 %v879, %v1142
        %1144 = vmatprep.mubr.bf16.mxu0 %v837
        %1145 = vmatmul.mubr.bf16.gmra.mxu0 %v836
        %v1146 = vpop.f32.mrf.mxu0
        %v1147 = vadd.f32 %v875, %v1146
        %v1148 = vpop.f32.mrf.mxu0
        %v1149 = vadd.f32 %v879, %v1148
        %v1150 = vpop.f32.mrf.mxu0
        %v1151 = vadd.f32 %v875, %v1150
        %v1152 = vpop.f32.mrf.mxu0
        %v1153 = vadd.f32 %v879, %v1152
        %1154 = vdwg.mxu0
        %v1155 = vmax.f32 %v1077, 0.0
        %v1156 = vmax.f32 %v1079, 0.0
        %v1157 = vmax.f32 %v1081, 0.0
        %v1158 = vmax.f32 %v1083, 0.0
        %v1159 = vmax.f32 %v1087, 0.0
        %v1160 = vmax.f32 %v1089, 0.0
        %v1161 = vmax.f32 %v1091, 0.0
        %v1162 = vmax.f32 %v1093, 0.0
        %v1163 = vmax.f32 %v1097, 0.0
        %v1164 = vmax.f32 %v1099, 0.0
        %v1165 = vmax.f32 %v1101, 0.0
        %v1166 = vmax.f32 %v1103, 0.0
        %v1167 = vmax.f32 %v1107, 0.0
        %v1168 = vmax.f32 %v1109, 0.0
        %v1169 = vmax.f32 %v1111, 0.0
        %v1170 = vmax.f32 %v1113, 0.0
        %v1171 = vmax.f32 %v1117, 0.0
        %v1172 = vmax.f32 %v1119, 0.0
        %v1173 = vmax.f32 %v1121, 0.0
        %v1174 = vmax.f32 %v1123, 0.0
        %v1175 = vmax.f32 %v1127, 0.0
        %v1176 = vmax.f32 %v1129, 0.0
        %v1177 = vmax.f32 %v1131, 0.0
        %v1178 = vmax.f32 %v1133, 0.0
        %v1179 = vmax.f32 %v1137, 0.0
        %v1180 = vmax.f32 %v1139, 0.0
        %v1181 = vmax.f32 %v1141, 0.0
        %v1182 = vmax.f32 %v1143, 0.0
        %v1183 = vmax.f32 %v1147, 0.0
        %v1184 = vmax.f32 %v1149, 0.0
        %v1185 = vmax.f32 %v1151, 0.0
        %v1186 = vmax.f32 %v1153, 0.0
        %v1187 = vpack.c.bf16 %v1157, %v1155
        %v1188 = vpack.c.bf16 %v1158, %v1156
        %v1189 = vpack.c.bf16 %v1161, %v1159
        %v1190 = vpack.c.bf16 %v1162, %v1160
        %v1191 = vpack.c.bf16 %v1165, %v1163
        %v1192 = vpack.c.bf16 %v1166, %v1164
        %v1193 = vpack.c.bf16 %v1169, %v1167
        %v1194 = vpack.c.bf16 %v1170, %v1168
        %v1195 = vpack.c.bf16 %v1173, %v1171
        %v1196 = vpack.c.bf16 %v1174, %v1172
        %v1197 = vpack.c.bf16 %v1177, %v1175
        %v1198 = vpack.c.bf16 %v1178, %v1176
        %v1199 = vpack.c.bf16 %v1181, %v1179
        %v1200 = vpack.c.bf16 %v1182, %v1180
        %v1201 = vpack.c.bf16 %v1185, %v1183
        %v1202 = vpack.c.bf16 %v1186, %v1184
        %v1203 = vld [vmem:[%s5] sm:$0xf]
        %v1204 = vld [vmem:[%s5 + $0x4] sm:$0xf]
        %v1205 = vld [vmem:[%s5 + $0x8] sm:$0xf]
        %v1206 = vld [vmem:[%s5 + $0xc] sm:$0xf]
        %v1207 = vld [vmem:[%s5 + $0x10] sm:$0xf]
        %v1208 = vld [vmem:[%s5 + $0x14] sm:$0xf]
        %v1209 = vld [vmem:[%s5 + $0x18] sm:$0xf]
        %v1210 = vld [vmem:[%s5 + $0x1c] sm:$0xf]
        %v1211 = vld [vmem:[%s5 + $0x20] sm:$0xf]
        %v1212 = vld [vmem:[%s5 + $0x24] sm:$0xf]
        %v1213 = vld [vmem:[%s5 + $0x28] sm:$0xf]
        %v1214 = vld [vmem:[%s5 + $0x2c] sm:$0xf]
        %v1215 = vld [vmem:[%s5 + $0x30] sm:$0xf]
        %v1216 = vld [vmem:[%s5 + $0x34] sm:$0xf]
        %v1217 = vld [vmem:[%s5 + $0x38] sm:$0xf]
        %v1218 = vld [vmem:[%s5 + $0x3c] sm:$0xf]
        %v1219 = vld [vmem:[%s5 + $0x40] sm:$0xf]
        %v1220 = vld [vmem:[%s5 + $0x44] sm:$0xf]
        %v1221 = vld [vmem:[%s5 + $0x48] sm:$0xf]
        %v1222 = vld [vmem:[%s5 + $0x4c] sm:$0xf]
        %v1223 = vld [vmem:[%s5 + $0x50] sm:$0xf]
        %v1224 = vld [vmem:[%s5 + $0x54] sm:$0xf]
        %v1225 = vld [vmem:[%s5 + $0x58] sm:$0xf]
        %v1226 = vld [vmem:[%s5 + $0x5c] sm:$0xf]
        %v1227 = vld [vmem:[%s5 + $0x60] sm:$0xf]
        %v1228 = vld [vmem:[%s5 + $0x64] sm:$0xf]
        %v1229 = vld [vmem:[%s5 + $0x68] sm:$0xf]
        %v1230 = vld [vmem:[%s5 + $0x6c] sm:$0xf]
        %v1231 = vld [vmem:[%s5 + $0x70] sm:$0xf]
        %v1232 = vld [vmem:[%s5 + $0x74] sm:$0xf]
        %v1233 = vld [vmem:[%s5 + $0x78] sm:$0xf]
        %v1234 = vld [vmem:[%s5 + $0x7c] sm:$0xf]
        %v1235 = vld [vmem:[%s6] sm:$0x1]
        %v1237 = vlaneseq
        %v1238 = vshrl.u32 %v1237, 7
        %v1239 = vsub.s32 0, %v1238
        %v1240 = vrot.slane %v1235, %v1239
        %v1274 = vunpack.c.l.b16 %v1203
        %v1275 = vunpack.c.l.b16 %v1204
        %v1276 = vunpack.c.l.b16 %v1205
        %v1277 = vunpack.c.l.b16 %v1206
        %v1278 = vunpack.c.l.b16 %v1207
        %v1279 = vunpack.c.l.b16 %v1208
        %v1280 = vunpack.c.l.b16 %v1209
        %v1281 = vunpack.c.l.b16 %v1210
        %v1282 = vunpack.c.l.b16 %v1211
        %v1283 = vunpack.c.l.b16 %v1212
        %v1284 = vunpack.c.l.b16 %v1213
        %v1285 = vunpack.c.l.b16 %v1214
        %v1286 = vunpack.c.l.b16 %v1215
        %v1287 = vunpack.c.l.b16 %v1216
        %v1288 = vunpack.c.l.b16 %v1217
        %v1289 = vunpack.c.l.b16 %v1218
        %v1290 = vunpack.c.l.b16 %v1219
        %v1291 = vunpack.c.l.b16 %v1220
        %v1292 = vunpack.c.l.b16 %v1221
        %v1293 = vunpack.c.l.b16 %v1222
        %v1294 = vunpack.c.l.b16 %v1223
        %v1295 = vunpack.c.l.b16 %v1224
        %v1296 = vunpack.c.l.b16 %v1225
        %v1297 = vunpack.c.l.b16 %v1226
        %v1298 = vunpack.c.l.b16 %v1227
        %v1299 = vunpack.c.l.b16 %v1228
        %v1300 = vunpack.c.l.b16 %v1229
        %v1301 = vunpack.c.l.b16 %v1230
        %v1302 = vunpack.c.l.b16 %v1231
        %v1303 = vunpack.c.l.b16 %v1232
        %v1304 = vunpack.c.l.b16 %v1233
        %v1305 = vunpack.c.l.b16 %v1234
        %v1306 = vpack.c.b16 %v1275, %v1274
        %v1307 = vpack.c.b16 %v1277, %v1276
        %v1308 = vpack.c.b16 %v1279, %v1278
        %v1309 = vpack.c.b16 %v1281, %v1280
        %v1310 = vpack.c.b16 %v1283, %v1282
        %v1311 = vpack.c.b16 %v1285, %v1284
        %v1312 = vpack.c.b16 %v1287, %v1286
        %v1313 = vpack.c.b16 %v1289, %v1288
        %v1314 = vpack.c.b16 %v1291, %v1290
        %v1315 = vpack.c.b16 %v1293, %v1292
        %v1316 = vpack.c.b16 %v1295, %v1294
        %v1317 = vpack.c.b16 %v1297, %v1296
        %v1318 = vpack.c.b16 %v1299, %v1298
        %v1319 = vpack.c.b16 %v1301, %v1300
        %v1320 = vpack.c.b16 %v1303, %v1302
        %v1321 = vpack.c.b16 %v1305, %v1304
        %1338 = vmatprep.subr.bf16.mxu0 0
        %1339 = vmatpush1.bf16.msra.mxu0 %v1313
        %1340 = vmatprep.subr.bf16.mxu0 0
        %1341 = vmatpush1.bf16.msra.mxu0 %v1312
        %1342 = vmatprep.subr.bf16.mxu0 0
        %1343 = vmatpush1.bf16.msra.mxu0 %v1311
        %1344 = vmatprep.subr.bf16.mxu0 0
        %1345 = vmatpush1.bf16.msra.mxu0 %v1310
        %1346 = vmatprep.subr.bf16.mxu0 0
        %1347 = vmatpush1.bf16.msra.mxu0 %v1309
        %1348 = vmatprep.subr.bf16.mxu0 0
        %1349 = vmatpush1.bf16.msra.mxu0 %v1308
        %1350 = vmatprep.subr.bf16.mxu0 0
        %1351 = vmatpush1.bf16.msra.mxu0 %v1307
        %1352 = vmatprep.subr.bf16.mxu0 0
        %1353 = vmatpush1.bf16.msra.mxu0 %v1306
        %1354 = vmatprep.subr.bf16.mxu0 0
        %1355 = vmatpush2.bf16.msra.mxu0 %v1321
        %1356 = vmatprep.subr.bf16.mxu0 0
        %1357 = vmatpush2.bf16.msra.mxu0 %v1320
        %1358 = vmatprep.subr.bf16.mxu0 0
        %1359 = vmatpush2.bf16.msra.mxu0 %v1319
        %1360 = vmatprep.subr.bf16.mxu0 0
        %1361 = vmatpush2.bf16.msra.mxu0 %v1318
        %1362 = vmatprep.subr.bf16.mxu0 0
        %1363 = vmatpush2.bf16.msra.mxu0 %v1317
        %1364 = vmatprep.subr.bf16.mxu0 0
        %1365 = vmatpush2.bf16.msra.mxu0 %v1316
        %1366 = vmatprep.subr.bf16.mxu0 0
        %1367 = vmatpush2.bf16.msra.mxu0 %v1315
        %1368 = vmatprep.subr.bf16.mxu0 0
        %1369 = vmatpush2.bf16.msra.mxu0 %v1314
        %1370 = vmatprep.mubr.bf16.mxu0 %v1188
        %1371 = vmatmul.mubr.bf16.gmra.mxu0 %v1187
        %v1372 = vpop.f32.mrf.mxu0
        %v1373 = vadd.f32 %v1240, %v1372
        %v1374 = vpop.f32.mrf.mxu0
        %v1375 = vpop.f32.mrf.mxu0
        %v1376 = vadd.f32 %v1240, %v1375
        %v1377 = vpop.f32.mrf.mxu0
        %1378 = vmatprep.mubr.bf16.mxu0 %v1190
        %1379 = vmatmul.mubr.bf16.gmra.mxu0 %v1189
        %v1380 = vpop.f32.mrf.mxu0
        %v1381 = vadd.f32 %v1240, %v1380
        %v1382 = vpop.f32.mrf.mxu0
        %v1383 = vpop.f32.mrf.mxu0
        %v1384 = vadd.f32 %v1240, %v1383
        %v1385 = vpop.f32.mrf.mxu0
        %1386 = vmatprep.mubr.bf16.mxu0 %v1192
        %1387 = vmatmul.mubr.bf16.gmra.mxu0 %v1191
        %v1388 = vpop.f32.mrf.mxu0
        %v1389 = vadd.f32 %v1240, %v1388
        %v1390 = vpop.f32.mrf.mxu0
        %v1391 = vpop.f32.mrf.mxu0
        %v1392 = vadd.f32 %v1240, %v1391
        %v1393 = vpop.f32.mrf.mxu0
        %1394 = vmatprep.mubr.bf16.mxu0 %v1194
        %1395 = vmatmul.mubr.bf16.gmra.mxu0 %v1193
        %v1396 = vpop.f32.mrf.mxu0
        %v1397 = vadd.f32 %v1240, %v1396
        %v1398 = vpop.f32.mrf.mxu0
        %v1399 = vpop.f32.mrf.mxu0
        %v1400 = vadd.f32 %v1240, %v1399
        %v1401 = vpop.f32.mrf.mxu0
        %1402 = vmatprep.mubr.bf16.mxu0 %v1196
        %1403 = vmatmul.mubr.bf16.gmra.mxu0 %v1195
        %v1404 = vpop.f32.mrf.mxu0
        %v1405 = vadd.f32 %v1240, %v1404
        %v1406 = vpop.f32.mrf.mxu0
        %v1407 = vpop.f32.mrf.mxu0
        %v1408 = vadd.f32 %v1240, %v1407
        %v1409 = vpop.f32.mrf.mxu0
        %1410 = vmatprep.mubr.bf16.mxu0 %v1198
        %1411 = vmatmul.mubr.bf16.gmra.mxu0 %v1197
        %v1412 = vpop.f32.mrf.mxu0
        %v1413 = vadd.f32 %v1240, %v1412
        %v1414 = vpop.f32.mrf.mxu0
        %v1415 = vpop.f32.mrf.mxu0
        %v1416 = vadd.f32 %v1240, %v1415
        %v1417 = vpop.f32.mrf.mxu0
        %1418 = vmatprep.mubr.bf16.mxu0 %v1200
        %1419 = vmatmul.mubr.bf16.gmra.mxu0 %v1199
        %v1420 = vpop.f32.mrf.mxu0
        %v1421 = vadd.f32 %v1240, %v1420
        %v1422 = vpop.f32.mrf.mxu0
        %v1423 = vpop.f32.mrf.mxu0
        %v1424 = vadd.f32 %v1240, %v1423
        %v1425 = vpop.f32.mrf.mxu0
        %1426 = vmatprep.mubr.bf16.mxu0 %v1202
        %1427 = vmatmul.mubr.bf16.gmra.mxu0 %v1201
        %v1428 = vpop.f32.mrf.mxu0
        %v1429 = vadd.f32 %v1240, %v1428
        %v1430 = vpop.f32.mrf.mxu0
        %v1431 = vpop.f32.mrf.mxu0
        %v1432 = vadd.f32 %v1240, %v1431
        %v1433 = vpop.f32.mrf.mxu0
        %1434 = vdwg.mxu0
        %1435 = vst [vmem:[%s359] sm:$0xff] %v1373
        %1436 = vst [vmem:[%s359 + $0x8] sm:$0xff] %v1376
        %1437 = vst [vmem:[%s359 + $0x10] sm:$0xff] %v1381
        %1438 = vst [vmem:[%s359 + $0x18] sm:$0xff] %v1384
        %1439 = vst [vmem:[%s359 + $0x20] sm:$0xff] %v1389
        %1440 = vst [vmem:[%s359 + $0x28] sm:$0xff] %v1392
        %1441 = vst [vmem:[%s359 + $0x30] sm:$0xff] %v1397
        %1442 = vst [vmem:[%s359 + $0x38] sm:$0xff] %v1400
        %1443 = vst [vmem:[%s359 + $0x40] sm:$0xff] %v1405
        %1444 = vst [vmem:[%s359 + $0x48] sm:$0xff] %v1408
        %1445 = vst [vmem:[%s359 + $0x50] sm:$0xff] %v1413
        %1446 = vst [vmem:[%s359 + $0x58] sm:$0xff] %v1416
        %1447 = vst [vmem:[%s359 + $0x60] sm:$0xff] %v1421
        %1448 = vst [vmem:[%s359 + $0x68] sm:$0xff] %v1424
        %1449 = vst [vmem:[%s359 + $0x70] sm:$0xff] %v1429
        %1450 = vst [vmem:[%s359 + $0x78] sm:$0xff] %v1432
        %v1451 = vld [vmem:[%s7] sm:$0xf]
        %v1452 = vld [vmem:[%s7 + $0x4] sm:$0xf]
        %v1453 = vld [vmem:[%s7 + $0x8] sm:$0xf]
        %v1454 = vld [vmem:[%s7 + $0xc] sm:$0xf]
        %v1455 = vld [vmem:[%s7 + $0x10] sm:$0xf]
        %v1456 = vld [vmem:[%s7 + $0x14] sm:$0xf]
        %v1457 = vld [vmem:[%s7 + $0x18] sm:$0xf]
        %v1458 = vld [vmem:[%s7 + $0x1c] sm:$0xf]
        %v1459 = vld [vmem:[%s7 + $0x20] sm:$0xf]
        %v1460 = vld [vmem:[%s7 + $0x24] sm:$0xf]
        %v1461 = vld [vmem:[%s7 + $0x28] sm:$0xf]
        %v1462 = vld [vmem:[%s7 + $0x2c] sm:$0xf]
        %v1463 = vld [vmem:[%s7 + $0x30] sm:$0xf]
        %v1464 = vld [vmem:[%s7 + $0x34] sm:$0xf]
        %v1465 = vld [vmem:[%s7 + $0x38] sm:$0xf]
        %v1466 = vld [vmem:[%s7 + $0x3c] sm:$0xf]
        %v1467 = vld [vmem:[%s7 + $0x40] sm:$0xf]
        %v1468 = vld [vmem:[%s7 + $0x44] sm:$0xf]
        %v1469 = vld [vmem:[%s7 + $0x48] sm:$0xf]
        %v1470 = vld [vmem:[%s7 + $0x4c] sm:$0xf]
        %v1471 = vld [vmem:[%s7 + $0x50] sm:$0xf]
        %v1472 = vld [vmem:[%s7 + $0x54] sm:$0xf]
        %v1473 = vld [vmem:[%s7 + $0x58] sm:$0xf]
        %v1474 = vld [vmem:[%s7 + $0x5c] sm:$0xf]
        %v1475 = vld [vmem:[%s7 + $0x60] sm:$0xf]
        %v1476 = vld [vmem:[%s7 + $0x64] sm:$0xf]
        %v1477 = vld [vmem:[%s7 + $0x68] sm:$0xf]
        %v1478 = vld [vmem:[%s7 + $0x6c] sm:$0xf]
        %v1479 = vld [vmem:[%s7 + $0x70] sm:$0xf]
        %v1480 = vld [vmem:[%s7 + $0x74] sm:$0xf]
        %v1481 = vld [vmem:[%s7 + $0x78] sm:$0xf]
        %v1482 = vld [vmem:[%s7 + $0x7c] sm:$0xf]
        %v1483 = vld [vmem:[%s8] sm:$0x1]
        %v1485 = vlaneseq
        %v1486 = vshrl.u32 %v1485, 7
        %v1487 = vsub.s32 0, %v1486
        %v1488 = vrot.slane %v1483, %v1487
        %v1522 = vunpack.c.l.b16 %v1451
        %v1523 = vunpack.c.l.b16 %v1452
        %v1524 = vunpack.c.l.b16 %v1453
        %v1525 = vunpack.c.l.b16 %v1454
        %v1526 = vunpack.c.l.b16 %v1455
        %v1527 = vunpack.c.l.b16 %v1456
        %v1528 = vunpack.c.l.b16 %v1457
        %v1529 = vunpack.c.l.b16 %v1458
        %v1530 = vunpack.c.l.b16 %v1459
        %v1531 = vunpack.c.l.b16 %v1460
        %v1532 = vunpack.c.l.b16 %v1461
        %v1533 = vunpack.c.l.b16 %v1462
        %v1534 = vunpack.c.l.b16 %v1463
        %v1535 = vunpack.c.l.b16 %v1464
        %v1536 = vunpack.c.l.b16 %v1465
        %v1537 = vunpack.c.l.b16 %v1466
        %v1538 = vunpack.c.l.b16 %v1467
        %v1539 = vunpack.c.l.b16 %v1468
        %v1540 = vunpack.c.l.b16 %v1469
        %v1541 = vunpack.c.l.b16 %v1470
        %v1542 = vunpack.c.l.b16 %v1471
        %v1543 = vunpack.c.l.b16 %v1472
        %v1544 = vunpack.c.l.b16 %v1473
        %v1545 = vunpack.c.l.b16 %v1474
        %v1546 = vunpack.c.l.b16 %v1475
        %v1547 = vunpack.c.l.b16 %v1476
        %v1548 = vunpack.c.l.b16 %v1477
        %v1549 = vunpack.c.l.b16 %v1478
        %v1550 = vunpack.c.l.b16 %v1479
        %v1551 = vunpack.c.l.b16 %v1480
        %v1552 = vunpack.c.l.b16 %v1481
        %v1553 = vunpack.c.l.b16 %v1482
        %v1554 = vpack.c.b16 %v1523, %v1522
        %v1555 = vpack.c.b16 %v1525, %v1524
        %v1556 = vpack.c.b16 %v1527, %v1526
        %v1557 = vpack.c.b16 %v1529, %v1528
        %v1558 = vpack.c.b16 %v1531, %v1530
        %v1559 = vpack.c.b16 %v1533, %v1532
        %v1560 = vpack.c.b16 %v1535, %v1534
        %v1561 = vpack.c.b16 %v1537, %v1536
        %v1562 = vpack.c.b16 %v1539, %v1538
        %v1563 = vpack.c.b16 %v1541, %v1540
        %v1564 = vpack.c.b16 %v1543, %v1542
        %v1565 = vpack.c.b16 %v1545, %v1544
        %v1566 = vpack.c.b16 %v1547, %v1546
        %v1567 = vpack.c.b16 %v1549, %v1548
        %v1568 = vpack.c.b16 %v1551, %v1550
        %v1569 = vpack.c.b16 %v1553, %v1552
        %1586 = vmatprep.subr.bf16.mxu0 0
        %1587 = vmatpush1.bf16.msra.mxu0 %v1561
        %1588 = vmatprep.subr.bf16.mxu0 0
        %1589 = vmatpush1.bf16.msra.mxu0 %v1560
        %1590 = vmatprep.subr.bf16.mxu0 0
        %1591 = vmatpush1.bf16.msra.mxu0 %v1559
        %1592 = vmatprep.subr.bf16.mxu0 0
        %1593 = vmatpush1.bf16.msra.mxu0 %v1558
        %1594 = vmatprep.subr.bf16.mxu0 0
        %1595 = vmatpush1.bf16.msra.mxu0 %v1557
        %1596 = vmatprep.subr.bf16.mxu0 0
        %1597 = vmatpush1.bf16.msra.mxu0 %v1556
        %1598 = vmatprep.subr.bf16.mxu0 0
        %1599 = vmatpush1.bf16.msra.mxu0 %v1555
        %1600 = vmatprep.subr.bf16.mxu0 0
        %1601 = vmatpush1.bf16.msra.mxu0 %v1554
        %1602 = vmatprep.subr.bf16.mxu0 0
        %1603 = vmatpush2.bf16.msra.mxu0 %v1569
        %1604 = vmatprep.subr.bf16.mxu0 0
        %1605 = vmatpush2.bf16.msra.mxu0 %v1568
        %1606 = vmatprep.subr.bf16.mxu0 0
        %1607 = vmatpush2.bf16.msra.mxu0 %v1567
        %1608 = vmatprep.subr.bf16.mxu0 0
        %1609 = vmatpush2.bf16.msra.mxu0 %v1566
        %1610 = vmatprep.subr.bf16.mxu0 0
        %1611 = vmatpush2.bf16.msra.mxu0 %v1565
        %1612 = vmatprep.subr.bf16.mxu0 0
        %1613 = vmatpush2.bf16.msra.mxu0 %v1564
        %1614 = vmatprep.subr.bf16.mxu0 0
        %1615 = vmatpush2.bf16.msra.mxu0 %v1563
        %1616 = vmatprep.subr.bf16.mxu0 0
        %1617 = vmatpush2.bf16.msra.mxu0 %v1562
        %1618 = vmatprep.mubr.bf16.mxu0 %v1188
        %1619 = vmatmul.mubr.bf16.gmra.mxu0 %v1187
        %v1620 = vpop.f32.mrf.mxu0
        %v1621 = vadd.f32 %v1488, %v1620
        %v1622 = vpop.f32.mrf.mxu0
        %v1623 = vpop.f32.mrf.mxu0
        %v1624 = vadd.f32 %v1488, %v1623
        %v1625 = vpop.f32.mrf.mxu0
        %1626 = vmatprep.mubr.bf16.mxu0 %v1190
        %1627 = vmatmul.mubr.bf16.gmra.mxu0 %v1189
        %v1628 = vpop.f32.mrf.mxu0
        %v1629 = vadd.f32 %v1488, %v1628
        %v1630 = vpop.f32.mrf.mxu0
        %v1631 = vpop.f32.mrf.mxu0
        %v1632 = vadd.f32 %v1488, %v1631
        %v1633 = vpop.f32.mrf.mxu0
        %1634 = vmatprep.mubr.bf16.mxu0 %v1192
        %1635 = vmatmul.mubr.bf16.gmra.mxu0 %v1191
        %v1636 = vpop.f32.mrf.mxu0
        %v1637 = vadd.f32 %v1488, %v1636
        %v1638 = vpop.f32.mrf.mxu0
        %v1639 = vpop.f32.mrf.mxu0
        %v1640 = vadd.f32 %v1488, %v1639
        %v1641 = vpop.f32.mrf.mxu0
        %1642 = vmatprep.mubr.bf16.mxu0 %v1194
        %1643 = vmatmul.mubr.bf16.gmra.mxu0 %v1193
        %v1644 = vpop.f32.mrf.mxu0
        %v1645 = vadd.f32 %v1488, %v1644
        %v1646 = vpop.f32.mrf.mxu0
        %v1647 = vpop.f32.mrf.mxu0
        %v1648 = vadd.f32 %v1488, %v1647
        %v1649 = vpop.f32.mrf.mxu0
        %1650 = vmatprep.mubr.bf16.mxu0 %v1196
        %1651 = vmatmul.mubr.bf16.gmra.mxu0 %v1195
        %v1652 = vpop.f32.mrf.mxu0
        %v1653 = vadd.f32 %v1488, %v1652
        %v1654 = vpop.f32.mrf.mxu0
        %v1655 = vpop.f32.mrf.mxu0
        %v1656 = vadd.f32 %v1488, %v1655
        %v1657 = vpop.f32.mrf.mxu0
        %1658 = vmatprep.mubr.bf16.mxu0 %v1198
        %1659 = vmatmul.mubr.bf16.gmra.mxu0 %v1197
        %v1660 = vpop.f32.mrf.mxu0
        %v1661 = vadd.f32 %v1488, %v1660
        %v1662 = vpop.f32.mrf.mxu0
        %v1663 = vpop.f32.mrf.mxu0
        %v1664 = vadd.f32 %v1488, %v1663
        %v1665 = vpop.f32.mrf.mxu0
        %1666 = vmatprep.mubr.bf16.mxu0 %v1200
        %1667 = vmatmul.mubr.bf16.gmra.mxu0 %v1199
        %v1668 = vpop.f32.mrf.mxu0
        %v1669 = vadd.f32 %v1488, %v1668
        %v1670 = vpop.f32.mrf.mxu0
        %v1671 = vpop.f32.mrf.mxu0
        %v1672 = vadd.f32 %v1488, %v1671
        %v1673 = vpop.f32.mrf.mxu0
        %1674 = vmatprep.mubr.bf16.mxu0 %v1202
        %1675 = vmatmul.mubr.bf16.gmra.mxu0 %v1201
        %v1676 = vpop.f32.mrf.mxu0
        %v1677 = vadd.f32 %v1488, %v1676
        %v1678 = vpop.f32.mrf.mxu0
        %v1679 = vpop.f32.mrf.mxu0
        %v1680 = vadd.f32 %v1488, %v1679
        %v1681 = vpop.f32.mrf.mxu0
        %1682 = vdwg.mxu0
        %v1683 = vmul.f32 %v1621, 1.442695
        %v1684 = vpow.pop %v1683
        %v1685 = vmul.f32 %v1624, 1.442695
        %v1686 = vpow.pop %v1685
        %v1687 = vmul.f32 %v1629, 1.442695
        %v1688 = vpow.pop %v1687
        %v1689 = vmul.f32 %v1632, 1.442695
        %v1690 = vpow.pop %v1689
        %v1691 = vmul.f32 %v1637, 1.442695
        %v1692 = vpow.pop %v1691
        %v1693 = vmul.f32 %v1640, 1.442695
        %v1694 = vpow.pop %v1693
        %v1695 = vmul.f32 %v1645, 1.442695
        %v1696 = vpow.pop %v1695
        %v1697 = vmul.f32 %v1648, 1.442695
        %v1698 = vpow.pop %v1697
        %v1699 = vmul.f32 %v1653, 1.442695
        %v1700 = vpow.pop %v1699
        %v1701 = vmul.f32 %v1656, 1.442695
        %v1702 = vpow.pop %v1701
        %v1703 = vmul.f32 %v1661, 1.442695
        %v1704 = vpow.pop %v1703
        %v1705 = vmul.f32 %v1664, 1.442695
        %v1706 = vpow.pop %v1705
        %v1707 = vmul.f32 %v1669, 1.442695
        %v1708 = vpow.pop %v1707
        %v1709 = vmul.f32 %v1672, 1.442695
        %v1710 = vpow.pop %v1709
        %v1711 = vmul.f32 %v1677, 1.442695
        %v1712 = vpow.pop %v1711
        %v1713 = vmul.f32 %v1680, 1.442695
        %v1714 = vpow.pop %v1713
        %1715 = vst [vmem:[%s366] sm:$0xff] %v1684
        %1716 = vst [vmem:[%s366 + $0x8] sm:$0xff] %v1686
        %1717 = vst [vmem:[%s366 + $0x10] sm:$0xff] %v1688
        %1718 = vst [vmem:[%s366 + $0x18] sm:$0xff] %v1690
        %1719 = vst [vmem:[%s366 + $0x20] sm:$0xff] %v1692
        %1720 = vst [vmem:[%s366 + $0x28] sm:$0xff] %v1694
        %1721 = vst [vmem:[%s366 + $0x30] sm:$0xff] %v1696
        %1722 = vst [vmem:[%s366 + $0x38] sm:$0xff] %v1698
        %1723 = vst [vmem:[%s366 + $0x40] sm:$0xff] %v1700
        %1724 = vst [vmem:[%s366 + $0x48] sm:$0xff] %v1702
        %1725 = vst [vmem:[%s366 + $0x50] sm:$0xff] %v1704
        %1726 = vst [vmem:[%s366 + $0x58] sm:$0xff] %v1706
        %1727 = vst [vmem:[%s366 + $0x60] sm:$0xff] %v1708
        %1728 = vst [vmem:[%s366 + $0x68] sm:$0xff] %v1710
        %1729 = vst [vmem:[%s366 + $0x70] sm:$0xff] %v1712
        %1730 = vst [vmem:[%s366 + $0x78] sm:$0xff] %v1714
        %s1731 = sand.u32 %s230, 1
        %s1732 = scalar_lea.sflag [#allocation3], %s1731
        %s1733 = sand.u32 %s230, 1
        %s1734 = smul.addr %s1733, 128
        %s1735 = scalar_lea.vmem [#allocation2], %s1734
        %s1736 = sand.u32 %s256, 1
        %s1737 = scalar_lea.sflag [#allocation5], %s1736
        %s1738 = sand.u32 %s256, 1
        %s1739 = smul.addr %s1738, 128
        %s1740 = scalar_lea.vmem [#allocation4], %s1739
        // Predicated region
        $region57: #{vamp_prior_forward.1} parent=55 // pred_check
          %p1741 = pneg %p240
        $region58: #{vamp_prior_forward.1} parent=55 // pred_check_branch
          %1743 = sbr.rel (%p1741) target = $region60
        $region59: #{vamp_prior_forward.1} parent=55 // pred_region
          %s1744 = smul.u32 16, %s28
          %s1746 = ssub.s32 2048, 2048
          %1747 = vsyncadd %s1732, %s1746
          %s1748 = smul.addr %s1744, 128
          %s1749 = scalar_lea.hbm %s9, %s1748
          %s1750 = sshll.u32 %s1735, 4
          %s1751 = int_to_ptr.vmem [resolvable:$true] %s1750
          %1756 = dma.vmem_to_hbm [thread:$0]  %s1751, 2048, %s1749, %s1732, 128, 128, 8
        $region60: #{vamp_prior_forward.1} parent=55 // pred_fallthru
          _
        // Predicated region
        $region61: #{vamp_prior_forward.1} parent=55 // pred_check
          %p1757 = pneg %p266
        $region62: #{vamp_prior_forward.1} parent=55 // pred_check_branch
          %1759 = sbr.rel (%p1757) target = $region64
        $region63: #{vamp_prior_forward.1} parent=55 // pred_region
          %s1760 = smul.u32 16, %s28
          %s1762 = ssub.s32 2048, 2048
          %1763 = vsyncadd %s1737, %s1762
          %s1764 = smul.addr %s1760, 128
          %s1765 = scalar_lea.hbm %s10, %s1764
          %s1766 = sshll.u32 %s1740, 4
          %s1767 = int_to_ptr.vmem [resolvable:$true] %s1766
          %1772 = dma.vmem_to_hbm [thread:$0]  %s1767, 2048, %s1765, %s1737, 128, 128, 8
        $region64: #{vamp_prior_forward.1} parent=55 // pred_fallthru
          _
      $region56: #{vamp_prior_forward.1} parent=5 // pred_fallthru
        _
      %p1773 = scmp.le.s32.totalorder 2, %s23
      // Predicated region
      $region65: #{vamp_prior_forward.1} parent=5 // pred_check
        %p1774 = pneg %p1773
      $region66: #{vamp_prior_forward.1} parent=5 // pred_check_branch
        %1776 = sbr.rel (%p1774) target = $region68
      $region67: #{vamp_prior_forward.1} parent=5 // pred_region
        %s1777 = ssub.s32 %s23, 2
        // Predicated region
        $region69: #{vamp_prior_forward.1} parent=67 // pred_check
          %p1778 = pneg %p246
        $region70: #{vamp_prior_forward.1} parent=67 // pred_check_branch
          %1780 = sbr.rel (%p1778) target = $region72
        $region71: #{vamp_prior_forward.1} parent=67 // pred_region
          %s1781 = sand.u32 %s231, 1
          %s1782 = scalar_lea.sflag [#allocation3], %s1781
          %s1783 = sand.u32 %s231, 1
          %s1784 = smul.addr %s1783, 128
          %s1785 = scalar_lea.vmem [#allocation2], %s1784
          %1786 = dma.done %s1782, 2048
        $region72: #{vamp_prior_forward.1} parent=67 // pred_fallthru
          _
        // Predicated region
        $region73: #{vamp_prior_forward.1} parent=67 // pred_check
          %p1787 = pneg %p272
        $region74: #{vamp_prior_forward.1} parent=67 // pred_check_branch
          %1789 = sbr.rel (%p1787) target = $region76
        $region75: #{vamp_prior_forward.1} parent=67 // pred_region
          %s1790 = sand.u32 %s257, 1
          %s1791 = scalar_lea.sflag [#allocation5], %s1790
          %s1792 = sand.u32 %s257, 1
          %s1793 = smul.addr %s1792, 128
          %s1794 = scalar_lea.vmem [#allocation4], %s1793
          %1795 = dma.done %s1791, 2048
        $region76: #{vamp_prior_forward.1} parent=67 // pred_fallthru
          _
      $region68: #{vamp_prior_forward.1} parent=5 // pred_fallthru
        _
    $region6: #{vamp_prior_forward.1} parent=1 // loop_footer
      %s27 = sadd.s32 1, %s23
    $region7: #{vamp_prior_forward.1} parent=1 // loop_footer_branch
      %22 = sbr.rel target = $region3
    $region8: #{vamp_prior_forward.1} parent=1 // loop_exit
      _
    %1796 = vsyncpa [#allocation3], 1
    %s1797 = scalar_lea.sflag [#allocation3], 1
    %1798 = vsyncpa %s1797, 1
    %1799 = vsyncpa [#allocation5], 1
    %s1800 = scalar_lea.sflag [#allocation5], 1
    %1801 = vsyncpa %s1800, 1

</llo_original>
